<compile_context>
chip_gen: v7x
topology: tpu7x:2x2x1
jax: 0.10.0
libtpu: 0.0.40
codegen_flags: <defaults>
</compile_context>

<pallas_src>
import functools

import jax
import jax.numpy as jnp
from jax import lax
from jax.experimental import pallas as pl
from jax.experimental.pallas import tpu as pltpu

HIDDEN = 32
NUM_HEADS = 8
HEAD_DIM = HIDDEN // NUM_HEADS          # 4
SCALE = HEAD_DIM ** (-0.5)
NUM_LAYERS = 3


def qga_fused_kernel(x_ref, wqkv_ref, bqkv_ref, wout_ref, bout_ref,
                     hmask_ref, bbias_ref, o_ref, *, num_layers, num_heads):
    """All `num_layers` attention layers fused; whole (B*S, D) slab in one shot.

    x_ref    : (BS, D)        flattened activations (BS = B*S)
    wqkv_ref : (D, 3D)        fused qkv projection (scale folded into q columns)
    bqkv_ref : (1, 3D)        fused qkv bias (scale folded into q part)
    wout_ref : (D, D)         to_out[0] weight
    bout_ref : (1, D)         to_out[0] bias
    hmask_ref: (H*BS, D)      head column mask: 1 where column d belongs to head h
    bbias_ref: (H*BS, BS)     additive batch mask: 0 same-batch, -1e30 cross-batch
    o_ref    : (BS, D)        output
    """
    BS, D = x_ref.shape
    H = num_heads

    # Small, lane-dense weights: hoist once (a handful of vregs total).
    wqkv = wqkv_ref[...]                                             # (D, 3D)
    bqkv = bqkv_ref[...]                                             # (1, 3D)
    wout = wout_ref[...]                                             # (D, D)
    bout = bout_ref[...]                                             # (1, D)

    cur = x_ref[...]                                                 # (BS, D)

    for _ in range(num_layers):                                      # static unroll (3)
        # ---- fused qkv projection: ONE matmul ----
        qkv = jnp.dot(cur, wqkv, preferred_element_type=jnp.float32) + bqkv  # (BS, 3D)
        q = qkv[:, 0 * D:1 * D]                                      # scale pre-folded
        k = qkv[:, 1 * D:2 * D]
        v = qkv[:, 2 * D:3 * D]

        # Re-read the padded masks each layer instead of pinning them in vregs.
        hmask = hmask_ref[...]                                       # (H*BS, D)

        # ---- block-diagonal (over heads) score matmul: ONE matmul ----
        # q_exp[h*BS + i, d] = q[i, d] if column d belongs to head h else 0
        q_exp = jnp.concatenate([q] * H, axis=0) * hmask             # (H*BS, D)
        # scores[h*BS + i, j] = sum_{d in head h} q[i, d] * k[j, d]
        scores = lax.dot_general(q_exp, k, (((1,), (1,)), ((), ())),
                                 preferred_element_type=jnp.float32)  # (H*BS, BS)
        scores = scores + bbias_ref[...]                             # kill cross-batch

        # ---- softmax over the key axis (natural lane reduction) ----
        scores = scores - jnp.max(scores, axis=-1, keepdims=True)
        p = jnp.exp(scores)
        attn = p * pl.reciprocal(jnp.sum(p, axis=-1, keepdims=True), approx=True)

        # ---- attn @ v: ONE matmul, then mask + head-merge via sublane adds ----
        ctx = jnp.dot(attn, v, preferred_element_type=jnp.float32)   # (H*BS, D)
        ctx = ctx * hmask                                            # keep head-h cols only
        merged = ctx[0 * BS:1 * BS, :]
        for h in range(1, H):                                        # 7 aligned VPU adds
            merged = merged + ctx[h * BS:(h + 1) * BS, :]            # (BS, D)

        # ---- output projection + residual: ONE matmul ----
        out = jnp.dot(merged, wout, preferred_element_type=jnp.float32) + bout
        cur = cur + out

    o_ref[...] = cur.astype(o_ref.dtype)


@jax.jit
def quantum_geometric_attention_forward(x, wqkv, bqkv, wout, bout):
    B, S, D = x.shape
    H = NUM_HEADS
    hd = D // H
    BS = B * S

    # ---- wrapper-side (XLA) prep: free / constant-folded under jit ----
    # Fold the attention scale into the q columns of the fused qkv weight+bias.
    scale_vec = jnp.concatenate([jnp.full((D,), SCALE, dtype=x.dtype),
                                 jnp.ones((2 * D,), dtype=x.dtype)])
    wqkv_s = wqkv * scale_vec[None, :]                               # (D, 3D)
    bqkv_s = bqkv.reshape(1, 3 * D) * scale_vec[None, :]             # (1, 3D)
    bout2 = bout.reshape(1, D)                                       # (1, D)

    # Static head-column mask: rows [h*BS, (h+1)*BS) keep only head h's columns.
    rows = jnp.arange(H * BS)
    head_of_row = rows // BS                                         # (H*BS,)
    head_of_col = jnp.arange(D) // hd                                # (D,)
    head_mask = (head_of_row[:, None] == head_of_col[None, :]).astype(x.dtype)

    # Static additive batch mask: -1e30 where query row and key row are from
    # different batch elements (so one softmax over the full lane axis is exact).
    q_batch = (rows % BS) // S                                       # (H*BS,)
    k_batch = jnp.arange(BS) // S                                    # (BS,)
    batch_bias = jnp.where(q_batch[:, None] == k_batch[None, :],
                           jnp.zeros((), x.dtype),
                           jnp.full((), -1e30, x.dtype))             # (H*BS, BS)

    x_flat = x.reshape(BS, D)

    # ---- advisory cost estimate ----
    flops = NUM_LAYERS * (2 * BS * D * 3 * D          # fused qkv projection
                          + 2 * H * BS * D * BS       # block-diag scores
                          + 2 * H * BS * BS * D       # attn @ v
                          + 2 * BS * D * D)           # output projection
    transcendentals = NUM_LAYERS * (H * BS * BS + H * BS)   # exp + reciprocal
    bytes_accessed = 4 * (2 * BS * D + D * 3 * D + 3 * D + D * D + D
                          + H * BS * D + H * BS * BS)

    kernel = functools.partial(qga_fused_kernel,
                               num_layers=NUM_LAYERS, num_heads=H)

    out_flat = pl.pallas_call(
        kernel,
        out_shape=jax.ShapeDtypeStruct((BS, D), x.dtype),
        cost_estimate=pl.CostEstimate(flops=flops,
                                      transcendentals=transcendentals,
                                      bytes_accessed=bytes_accessed),
    )(x_flat, wqkv_s, bqkv_s, wout, bout2, head_mask, batch_bias)

    return out_flat.reshape(B, S, D)


def reference_forward(x, wqkv, bqkv, wout, bout):
    """Pure-JAX reference mirroring the PyTorch forward (dropout=identity)."""
    B, S, D = x.shape
    cur = x
    for _ in range(NUM_LAYERS):
        qkv = cur @ wqkv + bqkv[0]
        q, k, v = jnp.split(qkv, 3, axis=-1)
        q = q.reshape(B, S, NUM_HEADS, HEAD_DIM).transpose(0, 2, 1, 3)
        k = k.reshape(B, S, NUM_HEADS, HEAD_DIM).transpose(0, 2, 1, 3)
        v = v.reshape(B, S, NUM_HEADS, HEAD_DIM).transpose(0, 2, 1, 3)
        dots = jnp.einsum("bhqd,bhkd->bhqk", q, k)
        attn = jax.nn.softmax(dots * SCALE, axis=-1)
        out = jnp.einsum("bhqk,bhkd->bhqd", attn, v)
        out = out.transpose(0, 2, 1, 3).reshape(B, S, D)
        out = out @ wout + bout[0]
        cur = cur + out
    return cur


if __name__ == "__main__":
    B, S, D = 2, 8, HIDDEN
    key = jax.random.PRNGKey(0)
    kx, kqkv, kout = jax.random.split(key, 3)

    # Deterministic parameter init matching the module's _init_weights scheme:
    #   to_qkv.weight ~ N(0, 0.02), bias = 0 ; to_out[0].weight ~ N(0, 0.02), bias = 0
    x = jax.random.normal(kx, (B, S, D), dtype=jnp.float32)
    wqkv = 0.02 * jax.random.normal(kqkv, (D, 3 * D), dtype=jnp.float32)
    bqkv = jnp.zeros((1, 3 * D), dtype=jnp.float32)
    wout = 0.02 * jax.random.normal(kout, (D, D), dtype=jnp.float32)
    bout = jnp.zeros((1, D), dtype=jnp.float32)

    ref = jax.block_until_ready(reference_forward(x, wqkv, bqkv, wout, bout))

    out = quantum_geometric_attention_forward(x, wqkv, bqkv, wout, bout)
    out = jax.block_until_ready(out)

    assert out.shape == (B, S, D)
    # Tolerance accounts for the approx (EUP) reciprocal in softmax and MXU f32 passes.
    assert jnp.allclose(out, ref, atol=1e-3, rtol=1e-3), "mismatch vs reference"

    print("KERNEL_OK")
</pallas_src>

<mosaic_0001>
module attributes {stable_mosaic.version = 11 : i64} {
  func.func @qga_fused_kernel(%arg0: memref<16x32xf32, #tpu.memory_space<vmem>>, %arg1: memref<32x96xf32, #tpu.memory_space<vmem>>, %arg2: memref<1x96xf32, #tpu.memory_space<vmem>>, %arg3: memref<32x32xf32, #tpu.memory_space<vmem>>, %arg4: memref<1x32xf32, #tpu.memory_space<vmem>>, %arg5: memref<128x32xf32, #tpu.memory_space<vmem>>, %arg6: memref<128x16xf32, #tpu.memory_space<vmem>>, %arg7: memref<16x32xf32, #tpu.memory_space<vmem>>) attributes {dimension_semantics = [], scalar_prefetch = 0 : i64, scratch_operands = 0 : i64, tpu.core_type = #tpu.core_type<tc>} {
    %c0 = arith.constant 0 : index
    %c0_0 = arith.constant 0 : index
    %0 = vector.load %arg1[%c0, %c0_0] : memref<32x96xf32, #tpu.memory_space<vmem>>, vector<32x96xf32>
    %c0_1 = arith.constant 0 : index
    %c0_2 = arith.constant 0 : index
    %1 = vector.load %arg2[%c0_1, %c0_2] : memref<1x96xf32, #tpu.memory_space<vmem>>, vector<1x96xf32>
    %c0_3 = arith.constant 0 : index
    %c0_4 = arith.constant 0 : index
    %2 = vector.load %arg3[%c0_3, %c0_4] : memref<32x32xf32, #tpu.memory_space<vmem>>, vector<32x32xf32>
    %c0_5 = arith.constant 0 : index
    %c0_6 = arith.constant 0 : index
    %3 = vector.load %arg4[%c0_5, %c0_6] : memref<1x32xf32, #tpu.memory_space<vmem>>, vector<1x32xf32>
    %c0_7 = arith.constant 0 : index
    %c0_8 = arith.constant 0 : index
    %4 = vector.load %arg0[%c0_7, %c0_8] : memref<16x32xf32, #tpu.memory_space<vmem>>, vector<16x32xf32>
    %cst = arith.constant dense<0.000000e+00> : vector<16x96xf32>
    %5 = tpu.matmul %4, %0, %cst {dimension_numbers = #tpu.dot_dimension_numbers<[1], [0], [0], [1], [0, 0, 1, 1], [], []>} : vector<16x32xf32>, vector<32x96xf32>, vector<16x96xf32> -> vector<16x96xf32>
    %6 = vector.broadcast %1 : vector<1x96xf32> to vector<16x96xf32>
    %7 = arith.addf %5, %6 : vector<16x96xf32>
    %8 = vector.extract_strided_slice %7 {offsets = [0, 0], sizes = [16, 32], strides = [1, 1]} : vector<16x96xf32> to vector<16x32xf32>
    %9 = vector.extract_strided_slice %7 {offsets = [0, 32], sizes = [16, 32], strides = [1, 1]} : vector<16x96xf32> to vector<16x32xf32>
    %10 = vector.extract_strided_slice %7 {offsets = [0, 64], sizes = [16, 32], strides = [1, 1]} : vector<16x96xf32> to vector<16x32xf32>
    %c0_9 = arith.constant 0 : index
    %c0_10 = arith.constant 0 : index
    %11 = vector.load %arg5[%c0_9, %c0_10] : memref<128x32xf32, #tpu.memory_space<vmem>>, vector<128x32xf32>
    %12 = tpu.concatenate %8, %8, %8, %8, %8, %8, %8, %8 in 0 : vector<16x32xf32>, vector<16x32xf32>, vector<16x32xf32>, vector<16x32xf32>, vector<16x32xf32>, vector<16x32xf32>, vector<16x32xf32>, vector<16x32xf32> -> vector<128x32xf32>
    %13 = arith.mulf %12, %11 : vector<128x32xf32>
    %cst_11 = arith.constant dense<0.000000e+00> : vector<128x16xf32>
    %14 = tpu.matmul %13, %9, %cst_11 {dimension_numbers = #tpu.dot_dimension_numbers<[1], [1], [0], [0], [0, 0, 1, 0], [], []>} : vector<128x32xf32>, vector<16x32xf32>, vector<128x16xf32> -> vector<128x16xf32>
    %c0_12 = arith.constant 0 : index
    %c0_13 = arith.constant 0 : index
    %15 = vector.load %arg6[%c0_12, %c0_13] : memref<128x16xf32, #tpu.memory_space<vmem>>, vector<128x16xf32>
    %16 = arith.addf %14, %15 : vector<128x16xf32>
    %cst_14 = arith.constant dense<0xFF800000> : vector<128xf32>
    %17 = vector.multi_reduction <maximumf>, %16, %cst_14 [1] : vector<128x16xf32> to vector<128xf32>
    %18 = vector.shape_cast %17 : vector<128xf32> to vector<128x1xf32>
    %19 = vector.broadcast %18 : vector<128x1xf32> to vector<128x16xf32>
    %20 = arith.subf %16, %19 : vector<128x16xf32>
    %21 = math.exp %20 : vector<128x16xf32>
    %cst_15 = arith.constant dense<0.000000e+00> : vector<128xf32>
    %22 = vector.multi_reduction <add>, %21, %cst_15 [1] : vector<128x16xf32> to vector<128xf32>
    %23 = vector.shape_cast %22 : vector<128xf32> to vector<128x1xf32>
    %24 = tpu.reciprocal %23 {approx = true} : vector<128x1xf32> -> vector<128x1xf32>
    %25 = vector.broadcast %24 : vector<128x1xf32> to vector<128x16xf32>
    %26 = arith.mulf %21, %25 : vector<128x16xf32>
    %cst_16 = arith.constant dense<0.000000e+00> : vector<128x32xf32>
    %27 = tpu.matmul %26, %10, %cst_16 {dimension_numbers = #tpu.dot_dimension_numbers<[1], [0], [0], [1], [0, 0, 1, 1], [], []>} : vector<128x16xf32>, vector<16x32xf32>, vector<128x32xf32> -> vector<128x32xf32>
    %28 = arith.mulf %27, %11 : vector<128x32xf32>
    %29 = vector.extract_strided_slice %28 {offsets = [0, 0], sizes = [16, 32], strides = [1, 1]} : vector<128x32xf32> to vector<16x32xf32>
    %30 = vector.extract_strided_slice %28 {offsets = [16, 0], sizes = [16, 32], strides = [1, 1]} : vector<128x32xf32> to vector<16x32xf32>
    %31 = arith.addf %29, %30 : vector<16x32xf32>
    %32 = vector.extract_strided_slice %28 {offsets = [32, 0], sizes = [16, 32], strides = [1, 1]} : vector<128x32xf32> to vector<16x32xf32>
    %33 = arith.addf %31, %32 : vector<16x32xf32>
    %34 = vector.extract_strided_slice %28 {offsets = [48, 0], sizes = [16, 32], strides = [1, 1]} : vector<128x32xf32> to vector<16x32xf32>
    %35 = arith.addf %33, %34 : vector<16x32xf32>
    %36 = vector.extract_strided_slice %28 {offsets = [64, 0], sizes = [16, 32], strides = [1, 1]} : vector<128x32xf32> to vector<16x32xf32>
    %37 = arith.addf %35, %36 : vector<16x32xf32>
    %38 = vector.extract_strided_slice %28 {offsets = [80, 0], sizes = [16, 32], strides = [1, 1]} : vector<128x32xf32> to vector<16x32xf32>
    %39 = arith.addf %37, %38 : vector<16x32xf32>
    %40 = vector.extract_strided_slice %28 {offsets = [96, 0], sizes = [16, 32], strides = [1, 1]} : vector<128x32xf32> to vector<16x32xf32>
    %41 = arith.addf %39, %40 : vector<16x32xf32>
    %42 = vector.extract_strided_slice %28 {offsets = [112, 0], sizes = [16, 32], strides = [1, 1]} : vector<128x32xf32> to vector<16x32xf32>
    %43 = arith.addf %41, %42 : vector<16x32xf32>
    %cst_17 = arith.constant dense<0.000000e+00> : vector<16x32xf32>
    %44 = tpu.matmul %43, %2, %cst_17 {dimension_numbers = #tpu.dot_dimension_numbers<[1], [0], [0], [1], [0, 0, 1, 1], [], []>} : vector<16x32xf32>, vector<32x32xf32>, vector<16x32xf32> -> vector<16x32xf32>
    %45 = vector.broadcast %3 : vector<1x32xf32> to vector<16x32xf32>
    %46 = arith.addf %44, %45 : vector<16x32xf32>
    %47 = arith.addf %4, %46 : vector<16x32xf32>
    %cst_18 = arith.constant dense<0.000000e+00> : vector<16x96xf32>
    %48 = tpu.matmul %47, %0, %cst_18 {dimension_numbers = #tpu.dot_dimension_numbers<[1], [0], [0], [1], [0, 0, 1, 1], [], []>} : vector<16x32xf32>, vector<32x96xf32>, vector<16x96xf32> -> vector<16x96xf32>
    %49 = vector.broadcast %1 : vector<1x96xf32> to vector<16x96xf32>
    %50 = arith.addf %48, %49 : vector<16x96xf32>
    %51 = vector.extract_strided_slice %50 {offsets = [0, 0], sizes = [16, 32], strides = [1, 1]} : vector<16x96xf32> to vector<16x32xf32>
    %52 = vector.extract_strided_slice %50 {offsets = [0, 32], sizes = [16, 32], strides = [1, 1]} : vector<16x96xf32> to vector<16x32xf32>
    %53 = vector.extract_strided_slice %50 {offsets = [0, 64], sizes = [16, 32], strides = [1, 1]} : vector<16x96xf32> to vector<16x32xf32>
    %c0_19 = arith.constant 0 : index
    %c0_20 = arith.constant 0 : index
    %54 = vector.load %arg5[%c0_19, %c0_20] : memref<128x32xf32, #tpu.memory_space<vmem>>, vector<128x32xf32>
    %55 = tpu.concatenate %51, %51, %51, %51, %51, %51, %51, %51 in 0 : vector<16x32xf32>, vector<16x32xf32>, vector<16x32xf32>, vector<16x32xf32>, vector<16x32xf32>, vector<16x32xf32>, vector<16x32xf32>, vector<16x32xf32> -> vector<128x32xf32>
    %56 = arith.mulf %55, %54 : vector<128x32xf32>
    %cst_21 = arith.constant dense<0.000000e+00> : vector<128x16xf32>
    %57 = tpu.matmul %56, %52, %cst_21 {dimension_numbers = #tpu.dot_dimension_numbers<[1], [1], [0], [0], [0, 0, 1, 0], [], []>} : vector<128x32xf32>, vector<16x32xf32>, vector<128x16xf32> -> vector<128x16xf32>
    %c0_22 = arith.constant 0 : index
    %c0_23 = arith.constant 0 : index
    %58 = vector.load %arg6[%c0_22, %c0_23] : memref<128x16xf32, #tpu.memory_space<vmem>>, vector<128x16xf32>
    %59 = arith.addf %57, %58 : vector<128x16xf32>
    %cst_24 = arith.constant dense<0xFF800000> : vector<128xf32>
    %60 = vector.multi_reduction <maximumf>, %59, %cst_24 [1] : vector<128x16xf32> to vector<128xf32>
    %61 = vector.shape_cast %60 : vector<128xf32> to vector<128x1xf32>
    %62 = vector.broadcast %61 : vector<128x1xf32> to vector<128x16xf32>
    %63 = arith.subf %59, %62 : vector<128x16xf32>
    %64 = math.exp %63 : vector<128x16xf32>
    %cst_25 = arith.constant dense<0.000000e+00> : vector<128xf32>
    %65 = vector.multi_reduction <add>, %64, %cst_25 [1] : vector<128x16xf32> to vector<128xf32>
    %66 = vector.shape_cast %65 : vector<128xf32> to vector<128x1xf32>
    %67 = tpu.reciprocal %66 {approx = true} : vector<128x1xf32> -> vector<128x1xf32>
    %68 = vector.broadcast %67 : vector<128x1xf32> to vector<128x16xf32>
    %69 = arith.mulf %64, %68 : vector<128x16xf32>
    %cst_26 = arith.constant dense<0.000000e+00> : vector<128x32xf32>
    %70 = tpu.matmul %69, %53, %cst_26 {dimension_numbers = #tpu.dot_dimension_numbers<[1], [0], [0], [1], [0, 0, 1, 1], [], []>} : vector<128x16xf32>, vector<16x32xf32>, vector<128x32xf32> -> vector<128x32xf32>
    %71 = arith.mulf %70, %54 : vector<128x32xf32>
    %72 = vector.extract_strided_slice %71 {offsets = [0, 0], sizes = [16, 32], strides = [1, 1]} : vector<128x32xf32> to vector<16x32xf32>
    %73 = vector.extract_strided_slice %71 {offsets = [16, 0], sizes = [16, 32], strides = [1, 1]} : vector<128x32xf32> to vector<16x32xf32>
    %74 = arith.addf %72, %73 : vector<16x32xf32>
    %75 = vector.extract_strided_slice %71 {offsets = [32, 0], sizes = [16, 32], strides = [1, 1]} : vector<128x32xf32> to vector<16x32xf32>
    %76 = arith.addf %74, %75 : vector<16x32xf32>
    %77 = vector.extract_strided_slice %71 {offsets = [48, 0], sizes = [16, 32], strides = [1, 1]} : vector<128x32xf32> to vector<16x32xf32>
    %78 = arith.addf %76, %77 : vector<16x32xf32>
    %79 = vector.extract_strided_slice %71 {offsets = [64, 0], sizes = [16, 32], strides = [1, 1]} : vector<128x32xf32> to vector<16x32xf32>
    %80 = arith.addf %78, %79 : vector<16x32xf32>
    %81 = vector.extract_strided_slice %71 {offsets = [80, 0], sizes = [16, 32], strides = [1, 1]} : vector<128x32xf32> to vector<16x32xf32>
    %82 = arith.addf %80, %81 : vector<16x32xf32>
    %83 = vector.extract_strided_slice %71 {offsets = [96, 0], sizes = [16, 32], strides = [1, 1]} : vector<128x32xf32> to vector<16x32xf32>
    %84 = arith.addf %82, %83 : vector<16x32xf32>
    %85 = vector.extract_strided_slice %71 {offsets = [112, 0], sizes = [16, 32], strides = [1, 1]} : vector<128x32xf32> to vector<16x32xf32>
    %86 = arith.addf %84, %85 : vector<16x32xf32>
    %cst_27 = arith.constant dense<0.000000e+00> : vector<16x32xf32>
    %87 = tpu.matmul %86, %2, %cst_27 {dimension_numbers = #tpu.dot_dimension_numbers<[1], [0], [0], [1], [0, 0, 1, 1], [], []>} : vector<16x32xf32>, vector<32x32xf32>, vector<16x32xf32> -> vector<16x32xf32>
    %88 = vector.broadcast %3 : vector<1x32xf32> to vector<16x32xf32>
    %89 = arith.addf %87, %88 : vector<16x32xf32>
    %90 = arith.addf %47, %89 : vector<16x32xf32>
    %cst_28 = arith.constant dense<0.000000e+00> : vector<16x96xf32>
    %91 = tpu.matmul %90, %0, %cst_28 {dimension_numbers = #tpu.dot_dimension_numbers<[1], [0], [0], [1], [0, 0, 1, 1], [], []>} : vector<16x32xf32>, vector<32x96xf32>, vector<16x96xf32> -> vector<16x96xf32>
    %92 = vector.broadcast %1 : vector<1x96xf32> to vector<16x96xf32>
    %93 = arith.addf %91, %92 : vector<16x96xf32>
    %94 = vector.extract_strided_slice %93 {offsets = [0, 0], sizes = [16, 32], strides = [1, 1]} : vector<16x96xf32> to vector<16x32xf32>
    %95 = vector.extract_strided_slice %93 {offsets = [0, 32], sizes = [16, 32], strides = [1, 1]} : vector<16x96xf32> to vector<16x32xf32>
    %96 = vector.extract_strided_slice %93 {offsets = [0, 64], sizes = [16, 32], strides = [1, 1]} : vector<16x96xf32> to vector<16x32xf32>
    %c0_29 = arith.constant 0 : index
    %c0_30 = arith.constant 0 : index
    %97 = vector.load %arg5[%c0_29, %c0_30] : memref<128x32xf32, #tpu.memory_space<vmem>>, vector<128x32xf32>
    %98 = tpu.concatenate %94, %94, %94, %94, %94, %94, %94, %94 in 0 : vector<16x32xf32>, vector<16x32xf32>, vector<16x32xf32>, vector<16x32xf32>, vector<16x32xf32>, vector<16x32xf32>, vector<16x32xf32>, vector<16x32xf32> -> vector<128x32xf32>
    %99 = arith.mulf %98, %97 : vector<128x32xf32>
    %cst_31 = arith.constant dense<0.000000e+00> : vector<128x16xf32>
    %100 = tpu.matmul %99, %95, %cst_31 {dimension_numbers = #tpu.dot_dimension_numbers<[1], [1], [0], [0], [0, 0, 1, 0], [], []>} : vector<128x32xf32>, vector<16x32xf32>, vector<128x16xf32> -> vector<128x16xf32>
    %c0_32 = arith.constant 0 : index
    %c0_33 = arith.constant 0 : index
    %101 = vector.load %arg6[%c0_32, %c0_33] : memref<128x16xf32, #tpu.memory_space<vmem>>, vector<128x16xf32>
    %102 = arith.addf %100, %101 : vector<128x16xf32>
    %cst_34 = arith.constant dense<0xFF800000> : vector<128xf32>
    %103 = vector.multi_reduction <maximumf>, %102, %cst_34 [1] : vector<128x16xf32> to vector<128xf32>
    %104 = vector.shape_cast %103 : vector<128xf32> to vector<128x1xf32>
    %105 = vector.broadcast %104 : vector<128x1xf32> to vector<128x16xf32>
    %106 = arith.subf %102, %105 : vector<128x16xf32>
    %107 = math.exp %106 : vector<128x16xf32>
    %cst_35 = arith.constant dense<0.000000e+00> : vector<128xf32>
    %108 = vector.multi_reduction <add>, %107, %cst_35 [1] : vector<128x16xf32> to vector<128xf32>
    %109 = vector.shape_cast %108 : vector<128xf32> to vector<128x1xf32>
    %110 = tpu.reciprocal %109 {approx = true} : vector<128x1xf32> -> vector<128x1xf32>
    %111 = vector.broadcast %110 : vector<128x1xf32> to vector<128x16xf32>
    %112 = arith.mulf %107, %111 : vector<128x16xf32>
    %cst_36 = arith.constant dense<0.000000e+00> : vector<128x32xf32>
    %113 = tpu.matmul %112, %96, %cst_36 {dimension_numbers = #tpu.dot_dimension_numbers<[1], [0], [0], [1], [0, 0, 1, 1], [], []>} : vector<128x16xf32>, vector<16x32xf32>, vector<128x32xf32> -> vector<128x32xf32>
    %114 = arith.mulf %113, %97 : vector<128x32xf32>
    %115 = vector.extract_strided_slice %114 {offsets = [0, 0], sizes = [16, 32], strides = [1, 1]} : vector<128x32xf32> to vector<16x32xf32>
    %116 = vector.extract_strided_slice %114 {offsets = [16, 0], sizes = [16, 32], strides = [1, 1]} : vector<128x32xf32> to vector<16x32xf32>
    %117 = arith.addf %115, %116 : vector<16x32xf32>
    %118 = vector.extract_strided_slice %114 {offsets = [32, 0], sizes = [16, 32], strides = [1, 1]} : vector<128x32xf32> to vector<16x32xf32>
    %119 = arith.addf %117, %118 : vector<16x32xf32>
    %120 = vector.extract_strided_slice %114 {offsets = [48, 0], sizes = [16, 32], strides = [1, 1]} : vector<128x32xf32> to vector<16x32xf32>
    %121 = arith.addf %119, %120 : vector<16x32xf32>
    %122 = vector.extract_strided_slice %114 {offsets = [64, 0], sizes = [16, 32], strides = [1, 1]} : vector<128x32xf32> to vector<16x32xf32>
    %123 = arith.addf %121, %122 : vector<16x32xf32>
    %124 = vector.extract_strided_slice %114 {offsets = [80, 0], sizes = [16, 32], strides = [1, 1]} : vector<128x32xf32> to vector<16x32xf32>
    %125 = arith.addf %123, %124 : vector<16x32xf32>
    %126 = vector.extract_strided_slice %114 {offsets = [96, 0], sizes = [16, 32], strides = [1, 1]} : vector<128x32xf32> to vector<16x32xf32>
    %127 = arith.addf %125, %126 : vector<16x32xf32>
    %128 = vector.extract_strided_slice %114 {offsets = [112, 0], sizes = [16, 32], strides = [1, 1]} : vector<128x32xf32> to vector<16x32xf32>
    %129 = arith.addf %127, %128 : vector<16x32xf32>
    %cst_37 = arith.constant dense<0.000000e+00> : vector<16x32xf32>
    %130 = tpu.matmul %129, %2, %cst_37 {dimension_numbers = #tpu.dot_dimension_numbers<[1], [0], [0], [1], [0, 0, 1, 1], [], []>} : vector<16x32xf32>, vector<32x32xf32>, vector<16x32xf32> -> vector<16x32xf32>
    %131 = vector.broadcast %3 : vector<1x32xf32> to vector<16x32xf32>
    %132 = arith.addf %130, %131 : vector<16x32xf32>
    %133 = arith.addf %90, %132 : vector<16x32xf32>
    %c0_38 = arith.constant 0 : index
    %c0_39 = arith.constant 0 : index
    %134 = vector.load %arg7[%c0_38, %c0_39] : memref<16x32xf32, #tpu.memory_space<vmem>>, vector<16x32xf32>
    tpu.vector_store %arg7[%c0_38, %c0_39], %133 {strides = array<i32>} : memref<16x32xf32, #tpu.memory_space<vmem>>, vector<16x32xf32>,
    return
  }
}

</mosaic_0001>

<llo_original>
// kernel: mul.9
$region0: #{mul.9}
  #allocation0 [shape = 's32[1]{0}', space=sflag, size = 0x4, scoped, tag = 'scoped memory for mul.9']
  %s0 = inlined_call_operand.vmem [shape: f32[1,96], index: 0, kind: input, shape index: {}]
  %s1 = inlined_call_operand.vmem [shape: f32[1,96], index: 1, kind: input, shape index: {}]
  %s2 = inlined_call_operand.vmem [shape: f32[1,96], index: 2, kind: output, shape index: {}]
  %v3 = vld [vmem:[%s0] sm:$0x1]
  %v4 = vld [vmem:[%s1] sm:$0x1]
  %5 = xla_tuple %v3, %v4
  %6 = xla_tuple %5
  %v7 = vmul.f32 %v3, %v4
  %8 = xla_tuple %v7
  %9 = vst [vmem:[%s2] sm:$0x1] %v7

// kernel: quantum_geometric_attention_forward.1
$region0: #{quantum_geometric_attention_forward.1}
  #allocation0 [shape = 'u32[]', space=smem, size = 0x4, offset = 0x4, fixed_abs, tag = 'smem constant byte address 0x4 - core index']
  #allocation1 [shape = 'u32[144,128]{1,0:T(1,128)}', space=vmem, size = 0x12000, scoped, tag = 'internal scratch']
  %s0 = inlined_call_operand.vmem [shape: f32[16,32], index: 0, kind: input, shape index: {}]
  %s1 = inlined_call_operand.vmem [shape: f32[32,96], index: 1, kind: input, shape index: {}]
  %s2 = inlined_call_operand.vmem [shape: f32[1,96], index: 2, kind: input, shape index: {}]
  %s3 = inlined_call_operand.vmem [shape: f32[32,32], index: 3, kind: input, shape index: {}]
  %s4 = inlined_call_operand.vmem [shape: f32[1,32], index: 4, kind: input, shape index: {}]
  %s5 = inlined_call_operand.vmem [shape: f32[128,32], index: 5, kind: input, shape index: {}]
  %s6 = inlined_call_operand.vmem [shape: f32[128,16], index: 6, kind: input, shape index: {}]
  %s7 = inlined_call_operand.hbm [shape: f32[16,32], index: 7, kind: output, shape index: {}]
  %s8 = sld [smem:[#allocation0]]
  $region38: #{quantum_geometric_attention_forward.1} parent=0
    _
  %s10 = ssub.s32 1, %s8
  %s11 = scalar_select 0, %s10, %s8
  $region1: #{quantum_geometric_attention_forward.1} parent=0
    #allocation2 [shape = 'u8[8192]{0}', space=vmem, size = 0x2000, scoped, tag = 'output window, operand 0, single buffered']
    #allocation3 [shape = 's32[1]{0}', space=sflag, size = 0x4, scoped, tag = 'scoped memory for quantum_geometric_attention_forward.1']
    %12 = vsyncpa [#allocation3], 0
    // Predicated region
    $region2: #{quantum_geometric_attention_forward.1} parent=1 // pred_check
      _
    $region3: #{quantum_geometric_attention_forward.1} parent=1 // pred_check_branch
      %14 = sbr.rel (0) target = $region5
    $region4: #{quantum_geometric_attention_forward.1} parent=1 // pred_region
      _
    $region5: #{quantum_geometric_attention_forward.1} parent=1 // pred_fallthru
      _
    // Predicated region
    $region6: #{quantum_geometric_attention_forward.1} parent=1 // pred_check
      _
    $region7: #{quantum_geometric_attention_forward.1} parent=1 // pred_check_branch
      %16 = sbr.rel (0) target = $region9
    $region8: #{quantum_geometric_attention_forward.1} parent=1 // pred_region
      _
    $region9: #{quantum_geometric_attention_forward.1} parent=1 // pred_fallthru
      _
    // Predicated region
    $region10: #{quantum_geometric_attention_forward.1} parent=1 // pred_check
      _
    $region11: #{quantum_geometric_attention_forward.1} parent=1 // pred_check_branch
      %18 = sbr.rel (0) target = $region13
    $region12: #{quantum_geometric_attention_forward.1} parent=1 // pred_region
      _
    $region13: #{quantum_geometric_attention_forward.1} parent=1 // pred_fallthru
      _
    // Predicated region
    $region14: #{quantum_geometric_attention_forward.1} parent=1 // pred_check
      _
    $region15: #{quantum_geometric_attention_forward.1} parent=1 // pred_check_branch
      %20 = sbr.rel (0) target = $region17
    $region16: #{quantum_geometric_attention_forward.1} parent=1 // pred_region
      _
    $region17: #{quantum_geometric_attention_forward.1} parent=1 // pred_fallthru
      _
    // Predicated region
    $region18: #{quantum_geometric_attention_forward.1} parent=1 // pred_check
      _
    $region19: #{quantum_geometric_attention_forward.1} parent=1 // pred_check_branch
      %22 = sbr.rel (0) target = $region21
    $region20: #{quantum_geometric_attention_forward.1} parent=1 // pred_region
      _
    $region21: #{quantum_geometric_attention_forward.1} parent=1 // pred_fallthru
      _
    // Predicated region
    $region22: #{quantum_geometric_attention_forward.1} parent=1 // pred_check
      _
    $region23: #{quantum_geometric_attention_forward.1} parent=1 // pred_check_branch
      %24 = sbr.rel (0) target = $region25
    $region24: #{quantum_geometric_attention_forward.1} parent=1 // pred_region
      _
    $region25: #{quantum_geometric_attention_forward.1} parent=1 // pred_fallthru
      _
    // Predicated region
    $region26: #{quantum_geometric_attention_forward.1} parent=1 // pred_check
      _
    $region27: #{quantum_geometric_attention_forward.1} parent=1 // pred_check_branch
      %26 = sbr.rel (0) target = $region29
    $region28: #{quantum_geometric_attention_forward.1} parent=1 // pred_region
      _
    $region29: #{quantum_geometric_attention_forward.1} parent=1 // pred_fallthru
      _
    %v27 = vld [vmem:[%s1] sm:$0xff]
    %v28 = vld [vmem:[%s1 + $0x8] sm:$0xff]
    %v29 = vld [vmem:[%s1 + $0x10] sm:$0xff]
    %v30 = vld [vmem:[%s1 + $0x18] sm:$0xff]
    %v31 = vld [vmem:[%s2] sm:$0x1]
    %v32 = vld [vmem:[%s3] sm:$0xff]
    %v33 = vld [vmem:[%s3 + $0x8] sm:$0xff]
    %v34 = vld [vmem:[%s3 + $0x10] sm:$0xff]
    %v35 = vld [vmem:[%s3 + $0x18] sm:$0xff]
    %v36 = vld [vmem:[%s4] sm:$0x1]
    %v37 = vld [vmem:[%s0] sm:$0xff]
    %v38 = vld [vmem:[%s0 + $0x8] sm:$0xff]
    %v40 = vlaneseq
    %v41 = vshrl.u32 %v40, 7
    %v42 = vsub.s32 0, %v41
    %v43 = vrot.slane %v31, %v42
    %vm45 = vcmask 261120
    %v47 = vsel %vm45, %v37, 0
    %v50 = vsel %vm45, %v38, 0
    %52 = vmatprep.subr.mxu0 0.0
    %53 = vmatpush1.msra.mxu0 %v27
    %54 = vmatprep.subr.mxu0 0.0
    %55 = vmatpush1.msra.mxu0 %v28
    %56 = vmatprep.subr.mxu0 0.0
    %57 = vmatpush1.msra.mxu0 %v29
    %58 = vmatprep.subr.mxu0 0.0
    %59 = vmatpush1.msra.mxu0 %v30
    %60 = vmatprep.subr.mxu0 0.0
    %61 = vmatpush1.msra.mxu0 0.0
    %62 = vmatprep.subr.mxu0 0.0
    %63 = vmatpush1.msra.mxu0 0.0
    %64 = vmatprep.subr.mxu0 0.0
    %65 = vmatpush1.msra.mxu0 0.0
    %66 = vmatprep.subr.mxu0 0.0
    %67 = vmatpush1.msra.mxu0 0.0
    %68 = vmatprep.subr.mxu0 0.0
    %69 = vmatpush1.msra.mxu0 0.0
    %70 = vmatprep.subr.mxu0 0.0
    %71 = vmatpush1.msra.mxu0 0.0
    %72 = vmatprep.subr.mxu0 0.0
    %73 = vmatpush1.msra.mxu0 0.0
    %74 = vmatprep.subr.mxu0 0.0
    %75 = vmatpush1.msra.mxu0 0.0
    %76 = vmatprep.subr.mxu0 0.0
    %77 = vmatpush1.msra.mxu0 0.0
    %78 = vmatprep.subr.mxu0 0.0
    %79 = vmatpush1.msra.mxu0 0.0
    %80 = vmatprep.subr.mxu0 0.0
    %81 = vmatpush1.msra.mxu0 0.0
    %82 = vmatprep.subr.mxu0 0.0
    %83 = vmatpush1.msra.mxu0 0.0
    %84 = vmatprep.subr.mxu0 0.0
    %85 = vmatpush1.msra.mxu0 0.0
    %86 = vmatprep.subr.mxu0 0.0
    %87 = vmatpush1.msra.mxu0 0.0
    %88 = vmatprep.subr.mxu0 0.0
    %89 = vmatpush1.msra.mxu0 0.0
    %90 = vmatprep.subr.mxu0 0.0
    %91 = vmatpush1.msra.mxu0 0.0
    %92 = vmatprep.subr.mxu0 0.0
    %93 = vmatpush1.msra.mxu0 0.0
    %94 = vmatprep.subr.mxu0 0.0
    %95 = vmatpush1.msra.mxu0 0.0
    %96 = vmatprep.subr.mxu0 0.0
    %97 = vmatpush1.msra.mxu0 0.0
    %98 = vmatprep.subr.mxu0 0.0
    %99 = vmatpush1.msra.mxu0 0.0
    %100 = vmatprep.subr.mxu0 0.0
    %101 = vmatpush1.msra.mxu0 0.0
    %102 = vmatprep.subr.mxu0 0.0
    %103 = vmatpush1.msra.mxu0 0.0
    %104 = vmatprep.subr.mxu0 0.0
    %105 = vmatpush1.msra.mxu0 0.0
    %106 = vmatprep.subr.mxu0 0.0
    %107 = vmatpush1.msra.mxu0 0.0
    %108 = vmatprep.subr.mxu0 0.0
    %109 = vmatpush1.msra.mxu0 0.0
    %110 = vmatprep.subr.mxu0 0.0
    %111 = vmatpush1.msra.mxu0 0.0
    %112 = vmatprep.subr.mxu0 0.0
    %113 = vmatpush1.msra.mxu0 0.0
    %114 = vmatprep.subr.mxu0 0.0
    %115 = vmatpush1.msra.mxu0 0.0
    %116 = vmatprep.mubr.f32.mxu0 0.0
    %117 = vmatmul.mubr.f32.gmra.mrb[0].mxu0 %v47
    %v118 = vpop.f32.mrb[0].mxu0
    %v119 = vadd.f32 %v43, %v118
    %v120 = vpop.f32.mrb[0].mxu0
    %121 = vmatprep.mubr.f32.mxu0 0.0
    %122 = vmatmul.mubr.f32.gmra.mrb[0].mxu0 %v50
    %v123 = vpop.f32.mrb[0].mxu0
    %v124 = vadd.f32 %v43, %v123
    %v125 = vpop.f32.mrb[0].mxu0
    %126 = vdwg.mxu0
    %v127 = vld [vmem:[%s5] sm:$0xff]
    %v128 = vld [vmem:[%s5 + $0x8] sm:$0xff]
    %v129 = vld [vmem:[%s5 + $0x10] sm:$0xff]
    %v130 = vld [vmem:[%s5 + $0x18] sm:$0xff]
    %v131 = vld [vmem:[%s5 + $0x20] sm:$0xff]
    %v132 = vld [vmem:[%s5 + $0x28] sm:$0xff]
    %v133 = vld [vmem:[%s5 + $0x30] sm:$0xff]
    %v134 = vld [vmem:[%s5 + $0x38] sm:$0xff]
    %v135 = vld [vmem:[%s5 + $0x40] sm:$0xff]
    %v136 = vld [vmem:[%s5 + $0x48] sm:$0xff]
    %v137 = vld [vmem:[%s5 + $0x50] sm:$0xff]
    %v138 = vld [vmem:[%s5 + $0x58] sm:$0xff]
    %v139 = vld [vmem:[%s5 + $0x60] sm:$0xff]
    %v140 = vld [vmem:[%s5 + $0x68] sm:$0xff]
    %v141 = vld [vmem:[%s5 + $0x70] sm:$0xff]
    %v142 = vld [vmem:[%s5 + $0x78] sm:$0xff]
    %v143 = vmul.f32 %v119, %v127
    %v144 = vmul.f32 %v124, %v128
    %v145 = vmul.f32 %v119, %v129
    %v146 = vmul.f32 %v124, %v130
    %v147 = vmul.f32 %v119, %v131
    %v148 = vmul.f32 %v124, %v132
    %v149 = vmul.f32 %v119, %v133
    %v150 = vmul.f32 %v124, %v134
    %v151 = vmul.f32 %v119, %v135
    %v152 = vmul.f32 %v124, %v136
    %v153 = vmul.f32 %v119, %v137
    %v154 = vmul.f32 %v124, %v138
    %v155 = vmul.f32 %v119, %v139
    %v156 = vmul.f32 %v124, %v140
    %v157 = vmul.f32 %v119, %v141
    %v158 = vmul.f32 %v124, %v142
    %v159 = vld [vmem:[%s6] sm:$0xff]
    %v160 = vld [vmem:[%s6 + $0x8] sm:$0xff]
    %v161 = vld [vmem:[%s6 + $0x10] sm:$0xff]
    %v162 = vld [vmem:[%s6 + $0x18] sm:$0xff]
    %v163 = vld [vmem:[%s6 + $0x20] sm:$0xff]
    %v164 = vld [vmem:[%s6 + $0x28] sm:$0xff]
    %v165 = vld [vmem:[%s6 + $0x30] sm:$0xff]
    %v166 = vld [vmem:[%s6 + $0x38] sm:$0xff]
    %v167 = vld [vmem:[%s6 + $0x40] sm:$0xff]
    %v168 = vld [vmem:[%s6 + $0x48] sm:$0xff]
    %v169 = vld [vmem:[%s6 + $0x50] sm:$0xff]
    %v170 = vld [vmem:[%s6 + $0x58] sm:$0xff]
    %v171 = vld [vmem:[%s6 + $0x60] sm:$0xff]
    %v172 = vld [vmem:[%s6 + $0x68] sm:$0xff]
    %v173 = vld [vmem:[%s6 + $0x70] sm:$0xff]
    %v174 = vld [vmem:[%s6 + $0x78] sm:$0xff]
    %177 = vrot.lane.b32.xlu0 %v119, 96
    %v178 = vpop.permute.xlu0 %177
    %179 = vrot.lane.b32.xlu0 %v124, 96
    %v180 = vpop.permute.xlu0 %179
    %v182 = vsel %vm45, %v143, 0
    %v185 = vsel %vm45, %v144, 0
    %v188 = vsel %vm45, %v145, 0
    %v191 = vsel %vm45, %v146, 0
    %v194 = vsel %vm45, %v147, 0
    %v197 = vsel %vm45, %v148, 0
    %v200 = vsel %vm45, %v149, 0
    %v203 = vsel %vm45, %v150, 0
    %v206 = vsel %vm45, %v151, 0
    %v209 = vsel %vm45, %v152, 0
    %v212 = vsel %vm45, %v153, 0
    %v215 = vsel %vm45, %v154, 0
    %v218 = vsel %vm45, %v155, 0
    %v221 = vsel %vm45, %v156, 0
    %v224 = vsel %vm45, %v157, 0
    %v227 = vsel %vm45, %v158, 0
    %v229 = vsel %vm45, %v178, 0
    %v231 = vsel %vm45, %v180, 0
    %233 = vmatprep.subr.mxu0 0.0
    %234 = vmatpush1.xpose.msra.mxu0 %v229
    %235 = vmatprep.subr.mxu0 0.0
    %236 = vmatpush1.xpose.msra.mxu0 %v231
    %237 = vmatprep.subr.mxu0 0.0
    %238 = vmatpush1.xpose.msra.mxu0 0.0
    %239 = vmatprep.subr.mxu0 0.0
    %240 = vmatpush1.xpose.msra.mxu0 0.0
    %241 = vmatprep.subr.mxu0 0.0
    %242 = vmatpush1.xpose.msra.mxu0 0.0
    %243 = vmatprep.subr.mxu0 0.0
    %244 = vmatpush1.xpose.msra.mxu0 0.0
    %245 = vmatprep.subr.mxu0 0.0
    %246 = vmatpush1.xpose.msra.mxu0 0.0
    %247 = vmatprep.subr.mxu0 0.0
    %248 = vmatpush1.xpose.msra.mxu0 0.0
    %249 = vmatprep.subr.mxu0 0.0
    %250 = vmatpush1.xpose.msra.mxu0 0.0
    %251 = vmatprep.subr.mxu0 0.0
    %252 = vmatpush1.xpose.msra.mxu0 0.0
    %253 = vmatprep.subr.mxu0 0.0
    %254 = vmatpush1.xpose.msra.mxu0 0.0
    %255 = vmatprep.subr.mxu0 0.0
    %256 = vmatpush1.xpose.msra.mxu0 0.0
    %257 = vmatprep.subr.mxu0 0.0
    %258 = vmatpush1.xpose.msra.mxu0 0.0
    %259 = vmatprep.subr.mxu0 0.0
    %260 = vmatpush1.xpose.msra.mxu0 0.0
    %261 = vmatprep.subr.mxu0 0.0
    %262 = vmatpush1.xpose.msra.mxu0 0.0
    %263 = vmatprep.subr.mxu0 0.0
    %264 = vmatpush1.xpose.msra.mxu0 0.0
    %265 = vmatprep.subr.mxu0 0.0
    %266 = vmatpush1.xpose.msra.mxu0 0.0
    %267 = vmatprep.subr.mxu0 0.0
    %268 = vmatpush1.xpose.msra.mxu0 0.0
    %269 = vmatprep.subr.mxu0 0.0
    %270 = vmatpush1.xpose.msra.mxu0 0.0
    %271 = vmatprep.subr.mxu0 0.0
    %272 = vmatpush1.xpose.msra.mxu0 0.0
    %273 = vmatprep.subr.mxu0 0.0
    %274 = vmatpush1.xpose.msra.mxu0 0.0
    %275 = vmatprep.subr.mxu0 0.0
    %276 = vmatpush1.xpose.msra.mxu0 0.0
    %277 = vmatprep.subr.mxu0 0.0
    %278 = vmatpush1.xpose.msra.mxu0 0.0
    %279 = vmatprep.subr.mxu0 0.0
    %280 = vmatpush1.xpose.msra.mxu0 0.0
    %281 = vmatprep.subr.mxu0 0.0
    %282 = vmatpush1.xpose.msra.mxu0 0.0
    %283 = vmatprep.subr.mxu0 0.0
    %284 = vmatpush1.xpose.msra.mxu0 0.0
    %285 = vmatprep.subr.mxu0 0.0
    %286 = vmatpush1.xpose.msra.mxu0 0.0
    %287 = vmatprep.subr.mxu0 0.0
    %288 = vmatpush1.xpose.msra.mxu0 0.0
    %289 = vmatprep.subr.mxu0 0.0
    %290 = vmatpush1.xpose.msra.mxu0 0.0
    %291 = vmatprep.subr.mxu0 0.0
    %292 = vmatpush1.xpose.msra.mxu0 0.0
    %293 = vmatprep.subr.mxu0 0.0
    %294 = vmatpush1.xpose.msra.mxu0 0.0
    %295 = vmatprep.subr.mxu0 0.0
    %296 = vmatpush1.xpose.msra.mxu0 0.0
    %297 = vmatprep.mubr.f32.mxu0 0.0
    %298 = vmatmul.mubr.f32.gmra.mrb[0].mxu0 %v182
    %v299 = vpop.f32.mrb[0].mxu0
    %v300 = vadd.f32 %v159, %v299
    %v301 = vpop.f32.mrb[0].mxu0
    %302 = vmatprep.mubr.f32.mxu0 0.0
    %303 = vmatmul.mubr.f32.gmra.mrb[0].mxu0 %v185
    %v304 = vpop.f32.mrb[0].mxu0
    %v305 = vadd.f32 %v160, %v304
    %v306 = vpop.f32.mrb[0].mxu0
    %307 = vmatprep.mubr.f32.mxu0 0.0
    %308 = vmatmul.mubr.f32.gmra.mrb[0].mxu0 %v188
    %v309 = vpop.f32.mrb[0].mxu0
    %v310 = vadd.f32 %v161, %v309
    %v311 = vpop.f32.mrb[0].mxu0
    %312 = vmatprep.mubr.f32.mxu0 0.0
    %313 = vmatmul.mubr.f32.gmra.mrb[0].mxu0 %v191
    %v314 = vpop.f32.mrb[0].mxu0
    %v315 = vadd.f32 %v162, %v314
    %v316 = vpop.f32.mrb[0].mxu0
    %317 = vmatprep.mubr.f32.mxu0 0.0
    %318 = vmatmul.mubr.f32.gmra.mrb[0].mxu0 %v194
    %v319 = vpop.f32.mrb[0].mxu0
    %v320 = vadd.f32 %v163, %v319
    %v321 = vpop.f32.mrb[0].mxu0
    %322 = vmatprep.mubr.f32.mxu0 0.0
    %323 = vmatmul.mubr.f32.gmra.mrb[0].mxu0 %v197
    %v324 = vpop.f32.mrb[0].mxu0
    %v325 = vadd.f32 %v164, %v324
    %v326 = vpop.f32.mrb[0].mxu0
    %327 = vmatprep.mubr.f32.mxu0 0.0
    %328 = vmatmul.mubr.f32.gmra.mrb[0].mxu0 %v200
    %v329 = vpop.f32.mrb[0].mxu0
    %v330 = vadd.f32 %v165, %v329
    %v331 = vpop.f32.mrb[0].mxu0
    %332 = vmatprep.mubr.f32.mxu0 0.0
    %333 = vmatmul.mubr.f32.gmra.mrb[0].mxu0 %v203
    %v334 = vpop.f32.mrb[0].mxu0
    %v335 = vadd.f32 %v166, %v334
    %v336 = vpop.f32.mrb[0].mxu0
    %337 = vmatprep.mubr.f32.mxu0 0.0
    %338 = vmatmul.mubr.f32.gmra.mrb[0].mxu0 %v206
    %v339 = vpop.f32.mrb[0].mxu0
    %v340 = vadd.f32 %v167, %v339
    %v341 = vpop.f32.mrb[0].mxu0
    %342 = vmatprep.mubr.f32.mxu0 0.0
    %343 = vmatmul.mubr.f32.gmra.mrb[0].mxu0 %v209
    %v344 = vpop.f32.mrb[0].mxu0
    %v345 = vadd.f32 %v168, %v344
    %v346 = vpop.f32.mrb[0].mxu0
    %347 = vmatprep.mubr.f32.mxu0 0.0
    %348 = vmatmul.mubr.f32.gmra.mrb[0].mxu0 %v212
    %v349 = vpop.f32.mrb[0].mxu0
    %v350 = vadd.f32 %v169, %v349
    %v351 = vpop.f32.mrb[0].mxu0
    %352 = vmatprep.mubr.f32.mxu0 0.0
    %353 = vmatmul.mubr.f32.gmra.mrb[0].mxu0 %v215
    %v354 = vpop.f32.mrb[0].mxu0
    %v355 = vadd.f32 %v170, %v354
    %v356 = vpop.f32.mrb[0].mxu0
    %357 = vmatprep.mubr.f32.mxu0 0.0
    %358 = vmatmul.mubr.f32.gmra.mrb[0].mxu0 %v218
    %v359 = vpop.f32.mrb[0].mxu0
    %v360 = vadd.f32 %v171, %v359
    %v361 = vpop.f32.mrb[0].mxu0
    %362 = vmatprep.mubr.f32.mxu0 0.0
    %363 = vmatmul.mubr.f32.gmra.mrb[0].mxu0 %v221
    %v364 = vpop.f32.mrb[0].mxu0
    %v365 = vadd.f32 %v172, %v364
    %v366 = vpop.f32.mrb[0].mxu0
    %367 = vmatprep.mubr.f32.mxu0 0.0
    %368 = vmatmul.mubr.f32.gmra.mrb[0].mxu0 %v224
    %v369 = vpop.f32.mrb[0].mxu0
    %v370 = vadd.f32 %v173, %v369
    %v371 = vpop.f32.mrb[0].mxu0
    %372 = vmatprep.mubr.f32.mxu0 0.0
    %373 = vmatmul.mubr.f32.gmra.mrb[0].mxu0 %v227
    %v374 = vpop.f32.mrb[0].mxu0
    %v375 = vadd.f32 %v174, %v374
    %v376 = vpop.f32.mrb[0].mxu0
    %377 = vdwg.mxu0
    %vm378 = vcmask 130048
    %v379 = vsel %vm378, %v300, -inf
    %380 = vmax.xlane.f32.xlu0 %v379
    %v381 = vpop.xlane.xlu0 %380
    %v382 = vsel %vm378, %v305, -inf
    %383 = vmax.xlane.f32.xlu0 %v382
    %v384 = vpop.xlane.xlu0 %383
    %v385 = vsel %vm378, %v310, -inf
    %386 = vmax.xlane.f32.xlu0 %v385
    %v387 = vpop.xlane.xlu0 %386
    %v388 = vsel %vm378, %v315, -inf
    %389 = vmax.xlane.f32.xlu0 %v388
    %v390 = vpop.xlane.xlu0 %389
    %v391 = vsel %vm378, %v320, -inf
    %392 = vmax.xlane.f32.xlu0 %v391
    %v393 = vpop.xlane.xlu0 %392
    %v394 = vsel %vm378, %v325, -inf
    %395 = vmax.xlane.f32.xlu0 %v394
    %v396 = vpop.xlane.xlu0 %395
    %v397 = vsel %vm378, %v330, -inf
    %398 = vmax.xlane.f32.xlu0 %v397
    %v399 = vpop.xlane.xlu0 %398
    %v400 = vsel %vm378, %v335, -inf
    %401 = vmax.xlane.f32.xlu0 %v400
    %v402 = vpop.xlane.xlu0 %401
    %v403 = vsel %vm378, %v340, -inf
    %404 = vmax.xlane.f32.xlu0 %v403
    %v405 = vpop.xlane.xlu0 %404
    %v406 = vsel %vm378, %v345, -inf
    %407 = vmax.xlane.f32.xlu0 %v406
    %v408 = vpop.xlane.xlu0 %407
    %v409 = vsel %vm378, %v350, -inf
    %410 = vmax.xlane.f32.xlu0 %v409
    %v411 = vpop.xlane.xlu0 %410
    %v412 = vsel %vm378, %v355, -inf
    %413 = vmax.xlane.f32.xlu0 %v412
    %v414 = vpop.xlane.xlu0 %413
    %v415 = vsel %vm378, %v360, -inf
    %416 = vmax.xlane.f32.xlu0 %v415
    %v417 = vpop.xlane.xlu0 %416
    %v418 = vsel %vm378, %v365, -inf
    %419 = vmax.xlane.f32.xlu0 %v418
    %v420 = vpop.xlane.xlu0 %419
    %v421 = vsel %vm378, %v370, -inf
    %422 = vmax.xlane.f32.xlu0 %v421
    %v423 = vpop.xlane.xlu0 %422
    %v424 = vsel %vm378, %v375, -inf
    %425 = vmax.xlane.f32.xlu0 %v424
    %v426 = vpop.xlane.xlu0 %425
    %v427 = vsub.f32 %v300, %v381
    %v428 = vsub.f32 %v305, %v384
    %v429 = vsub.f32 %v310, %v387
    %v430 = vsub.f32 %v315, %v390
    %v431 = vsub.f32 %v320, %v393
    %v432 = vsub.f32 %v325, %v396
    %v433 = vsub.f32 %v330, %v399
    %v434 = vsub.f32 %v335, %v402
    %v435 = vsub.f32 %v340, %v405
    %v436 = vsub.f32 %v345, %v408
    %v437 = vsub.f32 %v350, %v411
    %v438 = vsub.f32 %v355, %v414
    %v439 = vsub.f32 %v360, %v417
    %v440 = vsub.f32 %v365, %v420
    %v441 = vsub.f32 %v370, %v423
    %v442 = vsub.f32 %v375, %v426
    %v443 = vmul.f32 %v427, 1.442695
    %v444 = vpow.pop %v443
    %v445 = vmul.f32 %v428, 1.442695
    %v446 = vpow.pop %v445
    %v447 = vmul.f32 %v429, 1.442695
    %v448 = vpow.pop %v447
    %v449 = vmul.f32 %v430, 1.442695
    %v450 = vpow.pop %v449
    %v451 = vmul.f32 %v431, 1.442695
    %v452 = vpow.pop %v451
    %v453 = vmul.f32 %v432, 1.442695
    %v454 = vpow.pop %v453
    %v455 = vmul.f32 %v433, 1.442695
    %v456 = vpow.pop %v455
    %v457 = vmul.f32 %v434, 1.442695
    %v458 = vpow.pop %v457
    %v459 = vmul.f32 %v435, 1.442695
    %v460 = vpow.pop %v459
    %v461 = vmul.f32 %v436, 1.442695
    %v462 = vpow.pop %v461
    %v463 = vmul.f32 %v437, 1.442695
    %v464 = vpow.pop %v463
    %v465 = vmul.f32 %v438, 1.442695
    %v466 = vpow.pop %v465
    %v467 = vmul.f32 %v439, 1.442695
    %v468 = vpow.pop %v467
    %v469 = vmul.f32 %v440, 1.442695
    %v470 = vpow.pop %v469
    %v471 = vmul.f32 %v441, 1.442695
    %v472 = vpow.pop %v471
    %v473 = vmul.f32 %v442, 1.442695
    %v474 = vpow.pop %v473
    %v475 = vsel %vm378, %v444, 0.0
    %476 = vadd.xlane.f32.xlu0 %v475
    %v477 = vpop.xlane.xlu0 %476
    %v478 = vsel %vm378, %v446, 0.0
    %479 = vadd.xlane.f32.xlu0 %v478
    %v480 = vpop.xlane.xlu0 %479
    %v481 = vsel %vm378, %v448, 0.0
    %482 = vadd.xlane.f32.xlu0 %v481
    %v483 = vpop.xlane.xlu0 %482
    %v484 = vsel %vm378, %v450, 0.0
    %485 = vadd.xlane.f32.xlu0 %v484
    %v486 = vpop.xlane.xlu0 %485
    %v487 = vsel %vm378, %v452, 0.0
    %488 = vadd.xlane.f32.xlu0 %v487
    %v489 = vpop.xlane.xlu0 %488
    %v490 = vsel %vm378, %v454, 0.0
    %491 = vadd.xlane.f32.xlu0 %v490
    %v492 = vpop.xlane.xlu0 %491
    %v493 = vsel %vm378, %v456, 0.0
    %494 = vadd.xlane.f32.xlu0 %v493
    %v495 = vpop.xlane.xlu0 %494
    %v496 = vsel %vm378, %v458, 0.0
    %497 = vadd.xlane.f32.xlu0 %v496
    %v498 = vpop.xlane.xlu0 %497
    %v499 = vsel %vm378, %v460, 0.0
    %500 = vadd.xlane.f32.xlu0 %v499
    %v501 = vpop.xlane.xlu0 %500
    %v502 = vsel %vm378, %v462, 0.0
    %503 = vadd.xlane.f32.xlu0 %v502
    %v504 = vpop.xlane.xlu0 %503
    %v505 = vsel %vm378, %v464, 0.0
    %506 = vadd.xlane.f32.xlu0 %v505
    %v507 = vpop.xlane.xlu0 %506
    %v508 = vsel %vm378, %v466, 0.0
    %509 = vadd.xlane.f32.xlu0 %v508
    %v510 = vpop.xlane.xlu0 %509
    %v511 = vsel %vm378, %v468, 0.0
    %512 = vadd.xlane.f32.xlu0 %v511
    %v513 = vpop.xlane.xlu0 %512
    %v514 = vsel %vm378, %v470, 0.0
    %515 = vadd.xlane.f32.xlu0 %v514
    %v516 = vpop.xlane.xlu0 %515
    %v517 = vsel %vm378, %v472, 0.0
    %518 = vadd.xlane.f32.xlu0 %v517
    %v519 = vpop.xlane.xlu0 %518
    %v520 = vsel %vm378, %v474, 0.0
    %521 = vadd.xlane.f32.xlu0 %v520
    %v522 = vpop.xlane.xlu0 %521
    %v523 = vrcp.pop %v477
    %v524 = vrcp.pop %v480
    %v525 = vrcp.pop %v483
    %v526 = vrcp.pop %v486
    %v527 = vrcp.pop %v489
    %v528 = vrcp.pop %v492
    %v529 = vrcp.pop %v495
    %v530 = vrcp.pop %v498
    %v531 = vrcp.pop %v501
    %v532 = vrcp.pop %v504
    %v533 = vrcp.pop %v507
    %v534 = vrcp.pop %v510
    %v535 = vrcp.pop %v513
    %v536 = vrcp.pop %v516
    %v537 = vrcp.pop %v519
    %v538 = vrcp.pop %v522
    %v539 = vmul.f32 %v444, %v523
    %v540 = vmul.f32 %v446, %v524
    %v541 = vmul.f32 %v448, %v525
    %v542 = vmul.f32 %v450, %v526
    %v543 = vmul.f32 %v452, %v527
    %v544 = vmul.f32 %v454, %v528
    %v545 = vmul.f32 %v456, %v529
    %v546 = vmul.f32 %v458, %v530
    %v547 = vmul.f32 %v460, %v531
    %v548 = vmul.f32 %v462, %v532
    %v549 = vmul.f32 %v464, %v533
    %v550 = vmul.f32 %v466, %v534
    %v551 = vmul.f32 %v468, %v535
    %v552 = vmul.f32 %v470, %v536
    %v553 = vmul.f32 %v472, %v537
    %v554 = vmul.f32 %v474, %v538
    %555 = vrot.lane.b32.xlu0 %v119, 64
    %v556 = vpop.permute.xlu0 %555
    %557 = vrot.lane.b32.xlu0 %v124, 64
    %v558 = vpop.permute.xlu0 %557
    %v562 = vsel %vm378, %v539, 0
    %v565 = vsel %vm378, %v540, 0
    %v568 = vsel %vm378, %v541, 0
    %v571 = vsel %vm378, %v542, 0
    %v574 = vsel %vm378, %v543, 0
    %v577 = vsel %vm378, %v544, 0
    %v580 = vsel %vm378, %v545, 0
    %v583 = vsel %vm378, %v546, 0
    %v586 = vsel %vm378, %v547, 0
    %v589 = vsel %vm378, %v548, 0
    %v592 = vsel %vm378, %v549, 0
    %v595 = vsel %vm378, %v550, 0
    %v598 = vsel %vm378, %v551, 0
    %v601 = vsel %vm378, %v552, 0
    %v604 = vsel %vm378, %v553, 0
    %v607 = vsel %vm378, %v554, 0
    %609 = vmatprep.subr.mxu0 0.0
    %610 = vmatpush1.msra.mxu0 %v556
    %611 = vmatprep.subr.mxu0 0.0
    %612 = vmatpush1.msra.mxu0 %v558
    %613 = vmatprep.subr.mxu0 0.0
    %614 = vmatpush1.msra.mxu0 0.0
    %615 = vmatprep.subr.mxu0 0.0
    %616 = vmatpush1.msra.mxu0 0.0
    %617 = vmatprep.subr.mxu0 0.0
    %618 = vmatpush1.msra.mxu0 0.0
    %619 = vmatprep.subr.mxu0 0.0
    %620 = vmatpush1.msra.mxu0 0.0
    %621 = vmatprep.subr.mxu0 0.0
    %622 = vmatpush1.msra.mxu0 0.0
    %623 = vmatprep.subr.mxu0 0.0
    %624 = vmatpush1.msra.mxu0 0.0
    %625 = vmatprep.subr.mxu0 0.0
    %626 = vmatpush1.msra.mxu0 0.0
    %627 = vmatprep.subr.mxu0 0.0
    %628 = vmatpush1.msra.mxu0 0.0
    %629 = vmatprep.subr.mxu0 0.0
    %630 = vmatpush1.msra.mxu0 0.0
    %631 = vmatprep.subr.mxu0 0.0
    %632 = vmatpush1.msra.mxu0 0.0
    %633 = vmatprep.subr.mxu0 0.0
    %634 = vmatpush1.msra.mxu0 0.0
    %635 = vmatprep.subr.mxu0 0.0
    %636 = vmatpush1.msra.mxu0 0.0
    %637 = vmatprep.subr.mxu0 0.0
    %638 = vmatpush1.msra.mxu0 0.0
    %639 = vmatprep.subr.mxu0 0.0
    %640 = vmatpush1.msra.mxu0 0.0
    %641 = vmatprep.subr.mxu0 0.0
    %642 = vmatpush1.msra.mxu0 0.0
    %643 = vmatprep.subr.mxu0 0.0
    %644 = vmatpush1.msra.mxu0 0.0
    %645 = vmatprep.subr.mxu0 0.0
    %646 = vmatpush1.msra.mxu0 0.0
    %647 = vmatprep.subr.mxu0 0.0
    %648 = vmatpush1.msra.mxu0 0.0
    %649 = vmatprep.subr.mxu0 0.0
    %650 = vmatpush1.msra.mxu0 0.0
    %651 = vmatprep.subr.mxu0 0.0
    %652 = vmatpush1.msra.mxu0 0.0
    %653 = vmatprep.subr.mxu0 0.0
    %654 = vmatpush1.msra.mxu0 0.0
    %655 = vmatprep.subr.mxu0 0.0
    %656 = vmatpush1.msra.mxu0 0.0
    %657 = vmatprep.subr.mxu0 0.0
    %658 = vmatpush1.msra.mxu0 0.0
    %659 = vmatprep.subr.mxu0 0.0
    %660 = vmatpush1.msra.mxu0 0.0
    %661 = vmatprep.subr.mxu0 0.0
    %662 = vmatpush1.msra.mxu0 0.0
    %663 = vmatprep.subr.mxu0 0.0
    %664 = vmatpush1.msra.mxu0 0.0
    %665 = vmatprep.subr.mxu0 0.0
    %666 = vmatpush1.msra.mxu0 0.0
    %667 = vmatprep.subr.mxu0 0.0
    %668 = vmatpush1.msra.mxu0 0.0
    %669 = vmatprep.subr.mxu0 0.0
    %670 = vmatpush1.msra.mxu0 0.0
    %671 = vmatprep.subr.mxu0 0.0
    %672 = vmatpush1.msra.mxu0 0.0
    %673 = vmatprep.mubr.f32.mxu0 0.0
    %674 = vmatmul.mubr.f32.gmra.mrb[0].mxu0 %v562
    %v675 = vpop.f32.mrb[0].mxu0
    %v676 = vadd.f32 0.0, %v675
    %v677 = vpop.f32.mrb[0].mxu0
    %678 = vmatprep.mubr.f32.mxu0 0.0
    %679 = vmatmul.mubr.f32.gmra.mrb[0].mxu0 %v565
    %v680 = vpop.f32.mrb[0].mxu0
    %v681 = vadd.f32 0.0, %v680
    %v682 = vpop.f32.mrb[0].mxu0
    %683 = vmatprep.mubr.f32.mxu0 0.0
    %684 = vmatmul.mubr.f32.gmra.mrb[0].mxu0 %v568
    %v685 = vpop.f32.mrb[0].mxu0
    %v686 = vadd.f32 0.0, %v685
    %v687 = vpop.f32.mrb[0].mxu0
    %688 = vmatprep.mubr.f32.mxu0 0.0
    %689 = vmatmul.mubr.f32.gmra.mrb[0].mxu0 %v571
    %v690 = vpop.f32.mrb[0].mxu0
    %v691 = vadd.f32 0.0, %v690
    %v692 = vpop.f32.mrb[0].mxu0
    %693 = vmatprep.mubr.f32.mxu0 0.0
    %694 = vmatmul.mubr.f32.gmra.mrb[0].mxu0 %v574
    %v695 = vpop.f32.mrb[0].mxu0
    %v696 = vadd.f32 0.0, %v695
    %v697 = vpop.f32.mrb[0].mxu0
    %698 = vmatprep.mubr.f32.mxu0 0.0
    %699 = vmatmul.mubr.f32.gmra.mrb[0].mxu0 %v577
    %v700 = vpop.f32.mrb[0].mxu0
    %v701 = vadd.f32 0.0, %v700
    %v702 = vpop.f32.mrb[0].mxu0
    %703 = vmatprep.mubr.f32.mxu0 0.0
    %704 = vmatmul.mubr.f32.gmra.mrb[0].mxu0 %v580
    %v705 = vpop.f32.mrb[0].mxu0
    %v706 = vadd.f32 0.0, %v705
    %v707 = vpop.f32.mrb[0].mxu0
    %708 = vmatprep.mubr.f32.mxu0 0.0
    %709 = vmatmul.mubr.f32.gmra.mrb[0].mxu0 %v583
    %v710 = vpop.f32.mrb[0].mxu0
    %v711 = vadd.f32 0.0, %v710
    %v712 = vpop.f32.mrb[0].mxu0
    %713 = vmatprep.mubr.f32.mxu0 0.0
    %714 = vmatmul.mubr.f32.gmra.mrb[0].mxu0 %v586
    %v715 = vpop.f32.mrb[0].mxu0
    %v716 = vadd.f32 0.0, %v715
    %v717 = vpop.f32.mrb[0].mxu0
    %718 = vmatprep.mubr.f32.mxu0 0.0
    %719 = vmatmul.mubr.f32.gmra.mrb[0].mxu0 %v589
    %v720 = vpop.f32.mrb[0].mxu0
    %v721 = vadd.f32 0.0, %v720
    %v722 = vpop.f32.mrb[0].mxu0
    %723 = vmatprep.mubr.f32.mxu0 0.0
    %724 = vmatmul.mubr.f32.gmra.mrb[0].mxu0 %v592
    %v725 = vpop.f32.mrb[0].mxu0
    %v726 = vadd.f32 0.0, %v725
    %v727 = vpop.f32.mrb[0].mxu0
    %728 = vmatprep.mubr.f32.mxu0 0.0
    %729 = vmatmul.mubr.f32.gmra.mrb[0].mxu0 %v595
    %v730 = vpop.f32.mrb[0].mxu0
    %v731 = vadd.f32 0.0, %v730
    %v732 = vpop.f32.mrb[0].mxu0
    %733 = vmatprep.mubr.f32.mxu0 0.0
    %734 = vmatmul.mubr.f32.gmra.mrb[0].mxu0 %v598
    %v735 = vpop.f32.mrb[0].mxu0
    %v736 = vadd.f32 0.0, %v735
    %v737 = vpop.f32.mrb[0].mxu0
    %738 = vmatprep.mubr.f32.mxu0 0.0
    %739 = vmatmul.mubr.f32.gmra.mrb[0].mxu0 %v601
    %v740 = vpop.f32.mrb[0].mxu0
    %v741 = vadd.f32 0.0, %v740
    %v742 = vpop.f32.mrb[0].mxu0
    %743 = vmatprep.mubr.f32.mxu0 0.0
    %744 = vmatmul.mubr.f32.gmra.mrb[0].mxu0 %v604
    %v745 = vpop.f32.mrb[0].mxu0
    %v746 = vadd.f32 0.0, %v745
    %v747 = vpop.f32.mrb[0].mxu0
    %748 = vmatprep.mubr.f32.mxu0 0.0
    %749 = vmatmul.mubr.f32.gmra.mrb[0].mxu0 %v607
    %v750 = vpop.f32.mrb[0].mxu0
    %v751 = vadd.f32 0.0, %v750
    %v752 = vpop.f32.mrb[0].mxu0
    %753 = vdwg.mxu0
    %v754 = vmul.f32 %v676, %v127
    %v755 = vmul.f32 %v681, %v128
    %v756 = vmul.f32 %v686, %v129
    %v757 = vmul.f32 %v691, %v130
    %v758 = vmul.f32 %v696, %v131
    %v759 = vmul.f32 %v701, %v132
    %v760 = vmul.f32 %v706, %v133
    %v761 = vmul.f32 %v711, %v134
    %v762 = vmul.f32 %v716, %v135
    %v763 = vmul.f32 %v721, %v136
    %v764 = vmul.f32 %v726, %v137
    %v765 = vmul.f32 %v731, %v138
    %v766 = vmul.f32 %v736, %v139
    %v767 = vmul.f32 %v741, %v140
    %v768 = vmul.f32 %v746, %v141
    %v769 = vmul.f32 %v751, %v142
    %v770 = vadd.f32 %v754, %v756
    %v771 = vadd.f32 %v755, %v757
    %v772 = vadd.f32 %v770, %v758
    %v773 = vadd.f32 %v771, %v759
    %v774 = vadd.f32 %v772, %v760
    %v775 = vadd.f32 %v773, %v761
    %v776 = vadd.f32 %v774, %v762
    %v777 = vadd.f32 %v775, %v763
    %v778 = vadd.f32 %v776, %v764
    %v779 = vadd.f32 %v777, %v765
    %v780 = vadd.f32 %v778, %v766
    %v781 = vadd.f32 %v779, %v767
    %v782 = vadd.f32 %v780, %v768
    %v783 = vadd.f32 %v781, %v769
    %v785 = vlaneseq
    %v786 = vshrl.u32 %v785, 7
    %v787 = vsub.s32 0, %v786
    %v788 = vrot.slane %v36, %v787
    %v791 = vsel %vm45, %v782, 0
    %v794 = vsel %vm45, %v783, 0
    %796 = vmatprep.subr.mxu0 0.0
    %797 = vmatpush1.msra.mxu0 %v32
    %798 = vmatprep.subr.mxu0 0.0
    %799 = vmatpush1.msra.mxu0 %v33
    %800 = vmatprep.subr.mxu0 0.0
    %801 = vmatpush1.msra.mxu0 %v34
    %802 = vmatprep.subr.mxu0 0.0
    %803 = vmatpush1.msra.mxu0 %v35
    %804 = vmatprep.subr.mxu0 0.0
    %805 = vmatpush1.msra.mxu0 0.0
    %806 = vmatprep.subr.mxu0 0.0
    %807 = vmatpush1.msra.mxu0 0.0
    %808 = vmatprep.subr.mxu0 0.0
    %809 = vmatpush1.msra.mxu0 0.0
    %810 = vmatprep.subr.mxu0 0.0
    %811 = vmatpush1.msra.mxu0 0.0
    %812 = vmatprep.subr.mxu0 0.0
    %813 = vmatpush1.msra.mxu0 0.0
    %814 = vmatprep.subr.mxu0 0.0
    %815 = vmatpush1.msra.mxu0 0.0
    %816 = vmatprep.subr.mxu0 0.0
    %817 = vmatpush1.msra.mxu0 0.0
    %818 = vmatprep.subr.mxu0 0.0
    %819 = vmatpush1.msra.mxu0 0.0
    %820 = vmatprep.subr.mxu0 0.0
    %821 = vmatpush1.msra.mxu0 0.0
    %822 = vmatprep.subr.mxu0 0.0
    %823 = vmatpush1.msra.mxu0 0.0
    %824 = vmatprep.subr.mxu0 0.0
    %825 = vmatpush1.msra.mxu0 0.0
    %826 = vmatprep.subr.mxu0 0.0
    %827 = vmatpush1.msra.mxu0 0.0
    %828 = vmatprep.subr.mxu0 0.0
    %829 = vmatpush1.msra.mxu0 0.0
    %830 = vmatprep.subr.mxu0 0.0
    %831 = vmatpush1.msra.mxu0 0.0
    %832 = vmatprep.subr.mxu0 0.0
    %833 = vmatpush1.msra.mxu0 0.0
    %834 = vmatprep.subr.mxu0 0.0
    %835 = vmatpush1.msra.mxu0 0.0
    %836 = vmatprep.subr.mxu0 0.0
    %837 = vmatpush1.msra.mxu0 0.0
    %838 = vmatprep.subr.mxu0 0.0
    %839 = vmatpush1.msra.mxu0 0.0
    %840 = vmatprep.subr.mxu0 0.0
    %841 = vmatpush1.msra.mxu0 0.0
    %842 = vmatprep.subr.mxu0 0.0
    %843 = vmatpush1.msra.mxu0 0.0
    %844 = vmatprep.subr.mxu0 0.0
    %845 = vmatpush1.msra.mxu0 0.0
    %846 = vmatprep.subr.mxu0 0.0
    %847 = vmatpush1.msra.mxu0 0.0
    %848 = vmatprep.subr.mxu0 0.0
    %849 = vmatpush1.msra.mxu0 0.0
    %850 = vmatprep.subr.mxu0 0.0
    %851 = vmatpush1.msra.mxu0 0.0
    %852 = vmatprep.subr.mxu0 0.0
    %853 = vmatpush1.msra.mxu0 0.0
    %854 = vmatprep.subr.mxu0 0.0
    %855 = vmatpush1.msra.mxu0 0.0
    %856 = vmatprep.subr.mxu0 0.0
    %857 = vmatpush1.msra.mxu0 0.0
    %858 = vmatprep.subr.mxu0 0.0
    %859 = vmatpush1.msra.mxu0 0.0
    %860 = vmatprep.mubr.f32.mxu0 0.0
    %861 = vmatmul.mubr.f32.gmra.mrb[0].mxu0 %v791
    %v862 = vpop.f32.mrb[0].mxu0
    %v863 = vadd.f32 %v788, %v862
    %v864 = vpop.f32.mrb[0].mxu0
    %865 = vmatprep.mubr.f32.mxu0 0.0
    %866 = vmatmul.mubr.f32.gmra.mrb[0].mxu0 %v794
    %v867 = vpop.f32.mrb[0].mxu0
    %v868 = vadd.f32 %v788, %v867
    %v869 = vpop.f32.mrb[0].mxu0
    %870 = vdwg.mxu0
    %v871 = vadd.f32 %v37, %v863
    %v872 = vadd.f32 %v38, %v868
    %v874 = vsel %vm45, %v871, 0
    %v877 = vsel %vm45, %v872, 0
    %879 = vmatprep.subr.mxu0 0.0
    %880 = vmatpush1.msra.mxu0 %v27
    %881 = vmatprep.subr.mxu0 0.0
    %882 = vmatpush1.msra.mxu0 %v28
    %883 = vmatprep.subr.mxu0 0.0
    %884 = vmatpush1.msra.mxu0 %v29
    %885 = vmatprep.subr.mxu0 0.0
    %886 = vmatpush1.msra.mxu0 %v30
    %887 = vmatprep.subr.mxu0 0.0
    %888 = vmatpush1.msra.mxu0 0.0
    %889 = vmatprep.subr.mxu0 0.0
    %890 = vmatpush1.msra.mxu0 0.0
    %891 = vmatprep.subr.mxu0 0.0
    %892 = vmatpush1.msra.mxu0 0.0
    %893 = vmatprep.subr.mxu0 0.0
    %894 = vmatpush1.msra.mxu0 0.0
    %895 = vmatprep.subr.mxu0 0.0
    %896 = vmatpush1.msra.mxu0 0.0
    %897 = vmatprep.subr.mxu0 0.0
    %898 = vmatpush1.msra.mxu0 0.0
    %899 = vmatprep.subr.mxu0 0.0
    %900 = vmatpush1.msra.mxu0 0.0
    %901 = vmatprep.subr.mxu0 0.0
    %902 = vmatpush1.msra.mxu0 0.0
    %903 = vmatprep.subr.mxu0 0.0
    %904 = vmatpush1.msra.mxu0 0.0
    %905 = vmatprep.subr.mxu0 0.0
    %906 = vmatpush1.msra.mxu0 0.0
    %907 = vmatprep.subr.mxu0 0.0
    %908 = vmatpush1.msra.mxu0 0.0
    %909 = vmatprep.subr.mxu0 0.0
    %910 = vmatpush1.msra.mxu0 0.0
    %911 = vmatprep.subr.mxu0 0.0
    %912 = vmatpush1.msra.mxu0 0.0
    %913 = vmatprep.subr.mxu0 0.0
    %914 = vmatpush1.msra.mxu0 0.0
    %915 = vmatprep.subr.mxu0 0.0
    %916 = vmatpush1.msra.mxu0 0.0
    %917 = vmatprep.subr.mxu0 0.0
    %918 = vmatpush1.msra.mxu0 0.0
    %919 = vmatprep.subr.mxu0 0.0
    %920 = vmatpush1.msra.mxu0 0.0
    %921 = vmatprep.subr.mxu0 0.0
    %922 = vmatpush1.msra.mxu0 0.0
    %923 = vmatprep.subr.mxu0 0.0
    %924 = vmatpush1.msra.mxu0 0.0
    %925 = vmatprep.subr.mxu0 0.0
    %926 = vmatpush1.msra.mxu0 0.0
    %927 = vmatprep.subr.mxu0 0.0
    %928 = vmatpush1.msra.mxu0 0.0
    %929 = vmatprep.subr.mxu0 0.0
    %930 = vmatpush1.msra.mxu0 0.0
    %931 = vmatprep.subr.mxu0 0.0
    %932 = vmatpush1.msra.mxu0 0.0
    %933 = vmatprep.subr.mxu0 0.0
    %934 = vmatpush1.msra.mxu0 0.0
    %935 = vmatprep.subr.mxu0 0.0
    %936 = vmatpush1.msra.mxu0 0.0
    %937 = vmatprep.subr.mxu0 0.0
    %938 = vmatpush1.msra.mxu0 0.0
    %939 = vmatprep.subr.mxu0 0.0
    %940 = vmatpush1.msra.mxu0 0.0
    %941 = vmatprep.subr.mxu0 0.0
    %942 = vmatpush1.msra.mxu0 0.0
    %943 = vmatprep.mubr.f32.mxu0 0.0
    %944 = vmatmul.mubr.f32.gmra.mrb[0].mxu0 %v874
    %v945 = vpop.f32.mrb[0].mxu0
    %v946 = vadd.f32 %v43, %v945
    %v947 = vpop.f32.mrb[0].mxu0
    %948 = vmatprep.mubr.f32.mxu0 0.0
    %949 = vmatmul.mubr.f32.gmra.mrb[0].mxu0 %v877
    %v950 = vpop.f32.mrb[0].mxu0
    %v951 = vadd.f32 %v43, %v950
    %v952 = vpop.f32.mrb[0].mxu0
    %953 = vdwg.mxu0
    %v954 = vmul.f32 %v946, %v127
    %v955 = vmul.f32 %v951, %v128
    %v956 = vmul.f32 %v946, %v129
    %v957 = vmul.f32 %v951, %v130
    %v958 = vmul.f32 %v946, %v131
    %v959 = vmul.f32 %v951, %v132
    %v960 = vmul.f32 %v946, %v133
    %v961 = vmul.f32 %v951, %v134
    %v962 = vmul.f32 %v946, %v135
    %v963 = vmul.f32 %v951, %v136
    %v964 = vmul.f32 %v946, %v137
    %v965 = vmul.f32 %v951, %v138
    %v966 = vmul.f32 %v946, %v139
    %v967 = vmul.f32 %v951, %v140
    %v968 = vmul.f32 %v946, %v141
    %v969 = vmul.f32 %v951, %v142
    %972 = vrot.lane.b32.xlu0 %v946, 96
    %v973 = vpop.permute.xlu0 %972
    %974 = vrot.lane.b32.xlu0 %v951, 96
    %v975 = vpop.permute.xlu0 %974
    %v977 = vsel %vm45, %v954, 0
    %v980 = vsel %vm45, %v955, 0
    %v983 = vsel %vm45, %v956, 0
    %v986 = vsel %vm45, %v957, 0
    %v989 = vsel %vm45, %v958, 0
    %v992 = vsel %vm45, %v959, 0
    %v995 = vsel %vm45, %v960, 0
    %v998 = vsel %vm45, %v961, 0
    %v1001 = vsel %vm45, %v962, 0
    %v1004 = vsel %vm45, %v963, 0
    %v1007 = vsel %vm45, %v964, 0
    %v1010 = vsel %vm45, %v965, 0
    %v1013 = vsel %vm45, %v966, 0
    %v1016 = vsel %vm45, %v967, 0
    %v1019 = vsel %vm45, %v968, 0
    %v1022 = vsel %vm45, %v969, 0
    %v1024 = vsel %vm45, %v973, 0
    %v1026 = vsel %vm45, %v975, 0
    %1028 = vmatprep.subr.mxu0 0.0
    %1029 = vmatpush1.xpose.msra.mxu0 %v1024
    %1030 = vmatprep.subr.mxu0 0.0
    %1031 = vmatpush1.xpose.msra.mxu0 %v1026
    %1032 = vmatprep.subr.mxu0 0.0
    %1033 = vmatpush1.xpose.msra.mxu0 0.0
    %1034 = vmatprep.subr.mxu0 0.0
    %1035 = vmatpush1.xpose.msra.mxu0 0.0
    %1036 = vmatprep.subr.mxu0 0.0
    %1037 = vmatpush1.xpose.msra.mxu0 0.0
    %1038 = vmatprep.subr.mxu0 0.0
    %1039 = vmatpush1.xpose.msra.mxu0 0.0
    %1040 = vmatprep.subr.mxu0 0.0
    %1041 = vmatpush1.xpose.msra.mxu0 0.0
    %1042 = vmatprep.subr.mxu0 0.0
    %1043 = vmatpush1.xpose.msra.mxu0 0.0
    %1044 = vmatprep.subr.mxu0 0.0
    %1045 = vmatpush1.xpose.msra.mxu0 0.0
    %1046 = vmatprep.subr.mxu0 0.0
    %1047 = vmatpush1.xpose.msra.mxu0 0.0
    %1048 = vmatprep.subr.mxu0 0.0
    %1049 = vmatpush1.xpose.msra.mxu0 0.0
    %1050 = vmatprep.subr.mxu0 0.0
    %1051 = vmatpush1.xpose.msra.mxu0 0.0
    %1052 = vmatprep.subr.mxu0 0.0
    %1053 = vmatpush1.xpose.msra.mxu0 0.0
    %1054 = vmatprep.subr.mxu0 0.0
    %1055 = vmatpush1.xpose.msra.mxu0 0.0
    %1056 = vmatprep.subr.mxu0 0.0
    %1057 = vmatpush1.xpose.msra.mxu0 0.0
    %1058 = vmatprep.subr.mxu0 0.0
    %1059 = vmatpush1.xpose.msra.mxu0 0.0
    %1060 = vmatprep.subr.mxu0 0.0
    %1061 = vmatpush1.xpose.msra.mxu0 0.0
    %1062 = vmatprep.subr.mxu0 0.0
    %1063 = vmatpush1.xpose.msra.mxu0 0.0
    %1064 = vmatprep.subr.mxu0 0.0
    %1065 = vmatpush1.xpose.msra.mxu0 0.0
    %1066 = vmatprep.subr.mxu0 0.0
    %1067 = vmatpush1.xpose.msra.mxu0 0.0
    %1068 = vmatprep.subr.mxu0 0.0
    %1069 = vmatpush1.xpose.msra.mxu0 0.0
    %1070 = vmatprep.subr.mxu0 0.0
    %1071 = vmatpush1.xpose.msra.mxu0 0.0
    %1072 = vmatprep.subr.mxu0 0.0
    %1073 = vmatpush1.xpose.msra.mxu0 0.0
    %1074 = vmatprep.subr.mxu0 0.0
    %1075 = vmatpush1.xpose.msra.mxu0 0.0
    %1076 = vmatprep.subr.mxu0 0.0
    %1077 = vmatpush1.xpose.msra.mxu0 0.0
    %1078 = vmatprep.subr.mxu0 0.0
    %1079 = vmatpush1.xpose.msra.mxu0 0.0
    %1080 = vmatprep.subr.mxu0 0.0
    %1081 = vmatpush1.xpose.msra.mxu0 0.0
    %1082 = vmatprep.subr.mxu0 0.0
    %1083 = vmatpush1.xpose.msra.mxu0 0.0
    %1084 = vmatprep.subr.mxu0 0.0
    %1085 = vmatpush1.xpose.msra.mxu0 0.0
    %1086 = vmatprep.subr.mxu0 0.0
    %1087 = vmatpush1.xpose.msra.mxu0 0.0
    %1088 = vmatprep.subr.mxu0 0.0
    %1089 = vmatpush1.xpose.msra.mxu0 0.0
    %1090 = vmatprep.subr.mxu0 0.0
    %1091 = vmatpush1.xpose.msra.mxu0 0.0
    %1092 = vmatprep.mubr.f32.mxu0 0.0
    %1093 = vmatmul.mubr.f32.gmra.mrb[0].mxu0 %v977
    %v1094 = vpop.f32.mrb[0].mxu0
    %v1095 = vadd.f32 %v159, %v1094
    %v1096 = vpop.f32.mrb[0].mxu0
    %1097 = vmatprep.mubr.f32.mxu0 0.0
    %1098 = vmatmul.mubr.f32.gmra.mrb[0].mxu0 %v980
    %v1099 = vpop.f32.mrb[0].mxu0
    %v1100 = vadd.f32 %v160, %v1099
    %v1101 = vpop.f32.mrb[0].mxu0
    %1102 = vmatprep.mubr.f32.mxu0 0.0
    %1103 = vmatmul.mubr.f32.gmra.mrb[0].mxu0 %v983
    %v1104 = vpop.f32.mrb[0].mxu0
    %v1105 = vadd.f32 %v161, %v1104
    %v1106 = vpop.f32.mrb[0].mxu0
    %1107 = vmatprep.mubr.f32.mxu0 0.0
    %1108 = vmatmul.mubr.f32.gmra.mrb[0].mxu0 %v986
    %v1109 = vpop.f32.mrb[0].mxu0
    %v1110 = vadd.f32 %v162, %v1109
    %v1111 = vpop.f32.mrb[0].mxu0
    %1112 = vmatprep.mubr.f32.mxu0 0.0
    %1113 = vmatmul.mubr.f32.gmra.mrb[0].mxu0 %v989
    %v1114 = vpop.f32.mrb[0].mxu0
    %v1115 = vadd.f32 %v163, %v1114
    %v1116 = vpop.f32.mrb[0].mxu0
    %1117 = vmatprep.mubr.f32.mxu0 0.0
    %1118 = vmatmul.mubr.f32.gmra.mrb[0].mxu0 %v992
    %v1119 = vpop.f32.mrb[0].mxu0
    %v1120 = vadd.f32 %v164, %v1119
    %v1121 = vpop.f32.mrb[0].mxu0
    %1122 = vmatprep.mubr.f32.mxu0 0.0
    %1123 = vmatmul.mubr.f32.gmra.mrb[0].mxu0 %v995
    %v1124 = vpop.f32.mrb[0].mxu0
    %v1125 = vadd.f32 %v165, %v1124
    %v1126 = vpop.f32.mrb[0].mxu0
    %1127 = vmatprep.mubr.f32.mxu0 0.0
    %1128 = vmatmul.mubr.f32.gmra.mrb[0].mxu0 %v998
    %v1129 = vpop.f32.mrb[0].mxu0
    %v1130 = vadd.f32 %v166, %v1129
    %v1131 = vpop.f32.mrb[0].mxu0
    %1132 = vmatprep.mubr.f32.mxu0 0.0
    %1133 = vmatmul.mubr.f32.gmra.mrb[0].mxu0 %v1001
    %v1134 = vpop.f32.mrb[0].mxu0
    %v1135 = vadd.f32 %v167, %v1134
    %v1136 = vpop.f32.mrb[0].mxu0
    %1137 = vmatprep.mubr.f32.mxu0 0.0
    %1138 = vmatmul.mubr.f32.gmra.mrb[0].mxu0 %v1004
    %v1139 = vpop.f32.mrb[0].mxu0
    %v1140 = vadd.f32 %v168, %v1139
    %v1141 = vpop.f32.mrb[0].mxu0
    %1142 = vmatprep.mubr.f32.mxu0 0.0
    %1143 = vmatmul.mubr.f32.gmra.mrb[0].mxu0 %v1007
    %v1144 = vpop.f32.mrb[0].mxu0
    %v1145 = vadd.f32 %v169, %v1144
    %v1146 = vpop.f32.mrb[0].mxu0
    %1147 = vmatprep.mubr.f32.mxu0 0.0
    %1148 = vmatmul.mubr.f32.gmra.mrb[0].mxu0 %v1010
    %v1149 = vpop.f32.mrb[0].mxu0
    %v1150 = vadd.f32 %v170, %v1149
    %v1151 = vpop.f32.mrb[0].mxu0
    %1152 = vmatprep.mubr.f32.mxu0 0.0
    %1153 = vmatmul.mubr.f32.gmra.mrb[0].mxu0 %v1013
    %v1154 = vpop.f32.mrb[0].mxu0
    %v1155 = vadd.f32 %v171, %v1154
    %v1156 = vpop.f32.mrb[0].mxu0
    %1157 = vmatprep.mubr.f32.mxu0 0.0
    %1158 = vmatmul.mubr.f32.gmra.mrb[0].mxu0 %v1016
    %v1159 = vpop.f32.mrb[0].mxu0
    %v1160 = vadd.f32 %v172, %v1159
    %v1161 = vpop.f32.mrb[0].mxu0
    %1162 = vmatprep.mubr.f32.mxu0 0.0
    %1163 = vmatmul.mubr.f32.gmra.mrb[0].mxu0 %v1019
    %v1164 = vpop.f32.mrb[0].mxu0
    %v1165 = vadd.f32 %v173, %v1164
    %v1166 = vpop.f32.mrb[0].mxu0
    %1167 = vmatprep.mubr.f32.mxu0 0.0
    %1168 = vmatmul.mubr.f32.gmra.mrb[0].mxu0 %v1022
    %v1169 = vpop.f32.mrb[0].mxu0
    %v1170 = vadd.f32 %v174, %v1169
    %v1171 = vpop.f32.mrb[0].mxu0
    %1172 = vdwg.mxu0
    %v1173 = vsel %vm378, %v1095, -inf
    %1174 = vmax.xlane.f32.xlu0 %v1173
    %v1175 = vpop.xlane.xlu0 %1174
    %v1176 = vsel %vm378, %v1100, -inf
    %1177 = vmax.xlane.f32.xlu0 %v1176
    %v1178 = vpop.xlane.xlu0 %1177
    %v1179 = vsel %vm378, %v1105, -inf
    %1180 = vmax.xlane.f32.xlu0 %v1179
    %v1181 = vpop.xlane.xlu0 %1180
    %v1182 = vsel %vm378, %v1110, -inf
    %1183 = vmax.xlane.f32.xlu0 %v1182
    %v1184 = vpop.xlane.xlu0 %1183
    %v1185 = vsel %vm378, %v1115, -inf
    %1186 = vmax.xlane.f32.xlu0 %v1185
    %v1187 = vpop.xlane.xlu0 %1186
    %v1188 = vsel %vm378, %v1120, -inf
    %1189 = vmax.xlane.f32.xlu0 %v1188
    %v1190 = vpop.xlane.xlu0 %1189
    %v1191 = vsel %vm378, %v1125, -inf
    %1192 = vmax.xlane.f32.xlu0 %v1191
    %v1193 = vpop.xlane.xlu0 %1192
    %v1194 = vsel %vm378, %v1130, -inf
    %1195 = vmax.xlane.f32.xlu0 %v1194
    %v1196 = vpop.xlane.xlu0 %1195
    %v1197 = vsel %vm378, %v1135, -inf
    %1198 = vmax.xlane.f32.xlu0 %v1197
    %v1199 = vpop.xlane.xlu0 %1198
    %v1200 = vsel %vm378, %v1140, -inf
    %1201 = vmax.xlane.f32.xlu0 %v1200
    %v1202 = vpop.xlane.xlu0 %1201
    %v1203 = vsel %vm378, %v1145, -inf
    %1204 = vmax.xlane.f32.xlu0 %v1203
    %v1205 = vpop.xlane.xlu0 %1204
    %v1206 = vsel %vm378, %v1150, -inf
    %1207 = vmax.xlane.f32.xlu0 %v1206
    %v1208 = vpop.xlane.xlu0 %1207
    %v1209 = vsel %vm378, %v1155, -inf
    %1210 = vmax.xlane.f32.xlu0 %v1209
    %v1211 = vpop.xlane.xlu0 %1210
    %v1212 = vsel %vm378, %v1160, -inf
    %1213 = vmax.xlane.f32.xlu0 %v1212
    %v1214 = vpop.xlane.xlu0 %1213
    %v1215 = vsel %vm378, %v1165, -inf
    %1216 = vmax.xlane.f32.xlu0 %v1215
    %v1217 = vpop.xlane.xlu0 %1216
    %v1218 = vsel %vm378, %v1170, -inf
    %1219 = vmax.xlane.f32.xlu0 %v1218
    %v1220 = vpop.xlane.xlu0 %1219
    %v1221 = vsub.f32 %v1095, %v1175
    %v1222 = vsub.f32 %v1100, %v1178
    %v1223 = vsub.f32 %v1105, %v1181
    %v1224 = vsub.f32 %v1110, %v1184
    %v1225 = vsub.f32 %v1115, %v1187
    %v1226 = vsub.f32 %v1120, %v1190
    %v1227 = vsub.f32 %v1125, %v1193
    %v1228 = vsub.f32 %v1130, %v1196
    %v1229 = vsub.f32 %v1135, %v1199
    %v1230 = vsub.f32 %v1140, %v1202
    %v1231 = vsub.f32 %v1145, %v1205
    %v1232 = vsub.f32 %v1150, %v1208
    %v1233 = vsub.f32 %v1155, %v1211
    %v1234 = vsub.f32 %v1160, %v1214
    %v1235 = vsub.f32 %v1165, %v1217
    %v1236 = vsub.f32 %v1170, %v1220
    %v1237 = vmul.f32 %v1221, 1.442695
    %v1238 = vpow.pop %v1237
    %v1239 = vmul.f32 %v1222, 1.442695
    %v1240 = vpow.pop %v1239
    %v1241 = vmul.f32 %v1223, 1.442695
    %v1242 = vpow.pop %v1241
    %v1243 = vmul.f32 %v1224, 1.442695
    %v1244 = vpow.pop %v1243
    %v1245 = vmul.f32 %v1225, 1.442695
    %v1246 = vpow.pop %v1245
    %v1247 = vmul.f32 %v1226, 1.442695
    %v1248 = vpow.pop %v1247
    %v1249 = vmul.f32 %v1227, 1.442695
    %v1250 = vpow.pop %v1249
    %v1251 = vmul.f32 %v1228, 1.442695
    %v1252 = vpow.pop %v1251
    %v1253 = vmul.f32 %v1229, 1.442695
    %v1254 = vpow.pop %v1253
    %v1255 = vmul.f32 %v1230, 1.442695
    %v1256 = vpow.pop %v1255
    %v1257 = vmul.f32 %v1231, 1.442695
    %v1258 = vpow.pop %v1257
    %v1259 = vmul.f32 %v1232, 1.442695
    %v1260 = vpow.pop %v1259
    %v1261 = vmul.f32 %v1233, 1.442695
    %v1262 = vpow.pop %v1261
    %v1263 = vmul.f32 %v1234, 1.442695
    %v1264 = vpow.pop %v1263
    %v1265 = vmul.f32 %v1235, 1.442695
    %v1266 = vpow.pop %v1265
    %v1267 = vmul.f32 %v1236, 1.442695
    %v1268 = vpow.pop %v1267
    %v1269 = vsel %vm378, %v1238, 0.0
    %1270 = vadd.xlane.f32.xlu0 %v1269
    %v1271 = vpop.xlane.xlu0 %1270
    %v1272 = vsel %vm378, %v1240, 0.0
    %1273 = vadd.xlane.f32.xlu0 %v1272
    %v1274 = vpop.xlane.xlu0 %1273
    %v1275 = vsel %vm378, %v1242, 0.0
    %1276 = vadd.xlane.f32.xlu0 %v1275
    %v1277 = vpop.xlane.xlu0 %1276
    %v1278 = vsel %vm378, %v1244, 0.0
    %1279 = vadd.xlane.f32.xlu0 %v1278
    %v1280 = vpop.xlane.xlu0 %1279
    %v1281 = vsel %vm378, %v1246, 0.0
    %1282 = vadd.xlane.f32.xlu0 %v1281
    %v1283 = vpop.xlane.xlu0 %1282
    %v1284 = vsel %vm378, %v1248, 0.0
    %1285 = vadd.xlane.f32.xlu0 %v1284
    %v1286 = vpop.xlane.xlu0 %1285
    %v1287 = vsel %vm378, %v1250, 0.0
    %1288 = vadd.xlane.f32.xlu0 %v1287
    %v1289 = vpop.xlane.xlu0 %1288
    %v1290 = vsel %vm378, %v1252, 0.0
    %1291 = vadd.xlane.f32.xlu0 %v1290
    %v1292 = vpop.xlane.xlu0 %1291
    %v1293 = vsel %vm378, %v1254, 0.0
    %1294 = vadd.xlane.f32.xlu0 %v1293
    %v1295 = vpop.xlane.xlu0 %1294
    %v1296 = vsel %vm378, %v1256, 0.0
    %1297 = vadd.xlane.f32.xlu0 %v1296
    %v1298 = vpop.xlane.xlu0 %1297
    %v1299 = vsel %vm378, %v1258, 0.0
    %1300 = vadd.xlane.f32.xlu0 %v1299
    %v1301 = vpop.xlane.xlu0 %1300
    %v1302 = vsel %vm378, %v1260, 0.0
    %1303 = vadd.xlane.f32.xlu0 %v1302
    %v1304 = vpop.xlane.xlu0 %1303
    %v1305 = vsel %vm378, %v1262, 0.0
    %1306 = vadd.xlane.f32.xlu0 %v1305
    %v1307 = vpop.xlane.xlu0 %1306
    %v1308 = vsel %vm378, %v1264, 0.0
    %1309 = vadd.xlane.f32.xlu0 %v1308
    %v1310 = vpop.xlane.xlu0 %1309
    %v1311 = vsel %vm378, %v1266, 0.0
    %1312 = vadd.xlane.f32.xlu0 %v1311
    %v1313 = vpop.xlane.xlu0 %1312
    %v1314 = vsel %vm378, %v1268, 0.0
    %1315 = vadd.xlane.f32.xlu0 %v1314
    %v1316 = vpop.xlane.xlu0 %1315
    %v1317 = vrcp.pop %v1271
    %v1318 = vrcp.pop %v1274
    %v1319 = vrcp.pop %v1277
    %v1320 = vrcp.pop %v1280
    %v1321 = vrcp.pop %v1283
    %v1322 = vrcp.pop %v1286
    %v1323 = vrcp.pop %v1289
    %v1324 = vrcp.pop %v1292
    %v1325 = vrcp.pop %v1295
    %v1326 = vrcp.pop %v1298
    %v1327 = vrcp.pop %v1301
    %v1328 = vrcp.pop %v1304
    %v1329 = vrcp.pop %v1307
    %v1330 = vrcp.pop %v1310
    %v1331 = vrcp.pop %v1313
    %v1332 = vrcp.pop %v1316
    %v1333 = vmul.f32 %v1238, %v1317
    %v1334 = vmul.f32 %v1240, %v1318
    %v1335 = vmul.f32 %v1242, %v1319
    %v1336 = vmul.f32 %v1244, %v1320
    %v1337 = vmul.f32 %v1246, %v1321
    %v1338 = vmul.f32 %v1248, %v1322
    %v1339 = vmul.f32 %v1250, %v1323
    %v1340 = vmul.f32 %v1252, %v1324
    %v1341 = vmul.f32 %v1254, %v1325
    %v1342 = vmul.f32 %v1256, %v1326
    %v1343 = vmul.f32 %v1258, %v1327
    %v1344 = vmul.f32 %v1260, %v1328
    %v1345 = vmul.f32 %v1262, %v1329
    %v1346 = vmul.f32 %v1264, %v1330
    %v1347 = vmul.f32 %v1266, %v1331
    %v1348 = vmul.f32 %v1268, %v1332
    %1349 = vrot.lane.b32.xlu0 %v946, 64
    %v1350 = vpop.permute.xlu0 %1349
    %1351 = vrot.lane.b32.xlu0 %v951, 64
    %v1352 = vpop.permute.xlu0 %1351
    %v1356 = vsel %vm378, %v1333, 0
    %v1359 = vsel %vm378, %v1334, 0
    %v1362 = vsel %vm378, %v1335, 0
    %v1365 = vsel %vm378, %v1336, 0
    %v1368 = vsel %vm378, %v1337, 0
    %v1371 = vsel %vm378, %v1338, 0
    %v1374 = vsel %vm378, %v1339, 0
    %v1377 = vsel %vm378, %v1340, 0
    %v1380 = vsel %vm378, %v1341, 0
    %v1383 = vsel %vm378, %v1342, 0
    %v1386 = vsel %vm378, %v1343, 0
    %v1389 = vsel %vm378, %v1344, 0
    %v1392 = vsel %vm378, %v1345, 0
    %v1395 = vsel %vm378, %v1346, 0
    %v1398 = vsel %vm378, %v1347, 0
    %v1401 = vsel %vm378, %v1348, 0
    %1403 = vmatprep.subr.mxu0 0.0
    %1404 = vmatpush1.msra.mxu0 %v1350
    %1405 = vmatprep.subr.mxu0 0.0
    %1406 = vmatpush1.msra.mxu0 %v1352
    %1407 = vmatprep.subr.mxu0 0.0
    %1408 = vmatpush1.msra.mxu0 0.0
    %1409 = vmatprep.subr.mxu0 0.0
    %1410 = vmatpush1.msra.mxu0 0.0
    %1411 = vmatprep.subr.mxu0 0.0
    %1412 = vmatpush1.msra.mxu0 0.0
    %1413 = vmatprep.subr.mxu0 0.0
    %1414 = vmatpush1.msra.mxu0 0.0
    %1415 = vmatprep.subr.mxu0 0.0
    %1416 = vmatpush1.msra.mxu0 0.0
    %1417 = vmatprep.subr.mxu0 0.0
    %1418 = vmatpush1.msra.mxu0 0.0
    %1419 = vmatprep.subr.mxu0 0.0
    %1420 = vmatpush1.msra.mxu0 0.0
    %1421 = vmatprep.subr.mxu0 0.0
    %1422 = vmatpush1.msra.mxu0 0.0
    %1423 = vmatprep.subr.mxu0 0.0
    %1424 = vmatpush1.msra.mxu0 0.0
    %1425 = vmatprep.subr.mxu0 0.0
    %1426 = vmatpush1.msra.mxu0 0.0
    %1427 = vmatprep.subr.mxu0 0.0
    %1428 = vmatpush1.msra.mxu0 0.0
    %1429 = vmatprep.subr.mxu0 0.0
    %1430 = vmatpush1.msra.mxu0 0.0
    %1431 = vmatprep.subr.mxu0 0.0
    %1432 = vmatpush1.msra.mxu0 0.0
    %1433 = vmatprep.subr.mxu0 0.0
    %1434 = vmatpush1.msra.mxu0 0.0
    %1435 = vmatprep.subr.mxu0 0.0
    %1436 = vmatpush1.msra.mxu0 0.0
    %1437 = vmatprep.subr.mxu0 0.0
    %1438 = vmatpush1.msra.mxu0 0.0
    %1439 = vmatprep.subr.mxu0 0.0
    %1440 = vmatpush1.msra.mxu0 0.0
    %1441 = vmatprep.subr.mxu0 0.0
    %1442 = vmatpush1.msra.mxu0 0.0
    %1443 = vmatprep.subr.mxu0 0.0
    %1444 = vmatpush1.msra.mxu0 0.0
    %1445 = vmatprep.subr.mxu0 0.0
    %1446 = vmatpush1.msra.mxu0 0.0
    %1447 = vmatprep.subr.mxu0 0.0
    %1448 = vmatpush1.msra.mxu0 0.0
    %1449 = vmatprep.subr.mxu0 0.0
    %1450 = vmatpush1.msra.mxu0 0.0
    %1451 = vmatprep.subr.mxu0 0.0
    %1452 = vmatpush1.msra.mxu0 0.0
    %1453 = vmatprep.subr.mxu0 0.0
    %1454 = vmatpush1.msra.mxu0 0.0
    %1455 = vmatprep.subr.mxu0 0.0
    %1456 = vmatpush1.msra.mxu0 0.0
    %1457 = vmatprep.subr.mxu0 0.0
    %1458 = vmatpush1.msra.mxu0 0.0
    %1459 = vmatprep.subr.mxu0 0.0
    %1460 = vmatpush1.msra.mxu0 0.0
    %1461 = vmatprep.subr.mxu0 0.0
    %1462 = vmatpush1.msra.mxu0 0.0
    %1463 = vmatprep.subr.mxu0 0.0
    %1464 = vmatpush1.msra.mxu0 0.0
    %1465 = vmatprep.subr.mxu0 0.0
    %1466 = vmatpush1.msra.mxu0 0.0
    %1467 = vmatprep.mubr.f32.mxu0 0.0
    %1468 = vmatmul.mubr.f32.gmra.mrb[0].mxu0 %v1356
    %v1469 = vpop.f32.mrb[0].mxu0
    %v1470 = vadd.f32 0.0, %v1469
    %v1471 = vpop.f32.mrb[0].mxu0
    %1472 = vmatprep.mubr.f32.mxu0 0.0
    %1473 = vmatmul.mubr.f32.gmra.mrb[0].mxu0 %v1359
    %v1474 = vpop.f32.mrb[0].mxu0
    %v1475 = vadd.f32 0.0, %v1474
    %v1476 = vpop.f32.mrb[0].mxu0
    %1477 = vmatprep.mubr.f32.mxu0 0.0
    %1478 = vmatmul.mubr.f32.gmra.mrb[0].mxu0 %v1362
    %v1479 = vpop.f32.mrb[0].mxu0
    %v1480 = vadd.f32 0.0, %v1479
    %v1481 = vpop.f32.mrb[0].mxu0
    %1482 = vmatprep.mubr.f32.mxu0 0.0
    %1483 = vmatmul.mubr.f32.gmra.mrb[0].mxu0 %v1365
    %v1484 = vpop.f32.mrb[0].mxu0
    %v1485 = vadd.f32 0.0, %v1484
    %v1486 = vpop.f32.mrb[0].mxu0
    %1487 = vmatprep.mubr.f32.mxu0 0.0
    %1488 = vmatmul.mubr.f32.gmra.mrb[0].mxu0 %v1368
    %v1489 = vpop.f32.mrb[0].mxu0
    %v1490 = vadd.f32 0.0, %v1489
    %v1491 = vpop.f32.mrb[0].mxu0
    %1492 = vmatprep.mubr.f32.mxu0 0.0
    %1493 = vmatmul.mubr.f32.gmra.mrb[0].mxu0 %v1371
    %v1494 = vpop.f32.mrb[0].mxu0
    %v1495 = vadd.f32 0.0, %v1494
    %v1496 = vpop.f32.mrb[0].mxu0
    %1497 = vmatprep.mubr.f32.mxu0 0.0
    %1498 = vmatmul.mubr.f32.gmra.mrb[0].mxu0 %v1374
    %v1499 = vpop.f32.mrb[0].mxu0
    %v1500 = vadd.f32 0.0, %v1499
    %v1501 = vpop.f32.mrb[0].mxu0
    %1502 = vmatprep.mubr.f32.mxu0 0.0
    %1503 = vmatmul.mubr.f32.gmra.mrb[0].mxu0 %v1377
    %v1504 = vpop.f32.mrb[0].mxu0
    %v1505 = vadd.f32 0.0, %v1504
    %v1506 = vpop.f32.mrb[0].mxu0
    %1507 = vmatprep.mubr.f32.mxu0 0.0
    %1508 = vmatmul.mubr.f32.gmra.mrb[0].mxu0 %v1380
    %v1509 = vpop.f32.mrb[0].mxu0
    %v1510 = vadd.f32 0.0, %v1509
    %v1511 = vpop.f32.mrb[0].mxu0
    %1512 = vmatprep.mubr.f32.mxu0 0.0
    %1513 = vmatmul.mubr.f32.gmra.mrb[0].mxu0 %v1383
    %v1514 = vpop.f32.mrb[0].mxu0
    %v1515 = vadd.f32 0.0, %v1514
    %v1516 = vpop.f32.mrb[0].mxu0
    %1517 = vmatprep.mubr.f32.mxu0 0.0
    %1518 = vmatmul.mubr.f32.gmra.mrb[0].mxu0 %v1386
    %v1519 = vpop.f32.mrb[0].mxu0
    %v1520 = vadd.f32 0.0, %v1519
    %v1521 = vpop.f32.mrb[0].mxu0
    %1522 = vmatprep.mubr.f32.mxu0 0.0
    %1523 = vmatmul.mubr.f32.gmra.mrb[0].mxu0 %v1389
    %v1524 = vpop.f32.mrb[0].mxu0
    %v1525 = vadd.f32 0.0, %v1524
    %v1526 = vpop.f32.mrb[0].mxu0
    %1527 = vmatprep.mubr.f32.mxu0 0.0
    %1528 = vmatmul.mubr.f32.gmra.mrb[0].mxu0 %v1392
    %v1529 = vpop.f32.mrb[0].mxu0
    %v1530 = vadd.f32 0.0, %v1529
    %v1531 = vpop.f32.mrb[0].mxu0
    %1532 = vmatprep.mubr.f32.mxu0 0.0
    %1533 = vmatmul.mubr.f32.gmra.mrb[0].mxu0 %v1395
    %v1534 = vpop.f32.mrb[0].mxu0
    %v1535 = vadd.f32 0.0, %v1534
    %v1536 = vpop.f32.mrb[0].mxu0
    %1537 = vmatprep.mubr.f32.mxu0 0.0
    %1538 = vmatmul.mubr.f32.gmra.mrb[0].mxu0 %v1398
    %v1539 = vpop.f32.mrb[0].mxu0
    %v1540 = vadd.f32 0.0, %v1539
    %v1541 = vpop.f32.mrb[0].mxu0
    %1542 = vmatprep.mubr.f32.mxu0 0.0
    %1543 = vmatmul.mubr.f32.gmra.mrb[0].mxu0 %v1401
    %v1544 = vpop.f32.mrb[0].mxu0
    %v1545 = vadd.f32 0.0, %v1544
    %v1546 = vpop.f32.mrb[0].mxu0
    %1547 = vdwg.mxu0
    %v1548 = vmul.f32 %v1470, %v127
    %v1549 = vmul.f32 %v1475, %v128
    %v1550 = vmul.f32 %v1480, %v129
    %v1551 = vmul.f32 %v1485, %v130
    %v1552 = vmul.f32 %v1490, %v131
    %v1553 = vmul.f32 %v1495, %v132
    %v1554 = vmul.f32 %v1500, %v133
    %v1555 = vmul.f32 %v1505, %v134
    %v1556 = vmul.f32 %v1510, %v135
    %v1557 = vmul.f32 %v1515, %v136
    %v1558 = vmul.f32 %v1520, %v137
    %v1559 = vmul.f32 %v1525, %v138
    %v1560 = vmul.f32 %v1530, %v139
    %v1561 = vmul.f32 %v1535, %v140
    %v1562 = vmul.f32 %v1540, %v141
    %v1563 = vmul.f32 %v1545, %v142
    %v1564 = vadd.f32 %v1548, %v1550
    %v1565 = vadd.f32 %v1549, %v1551
    %v1566 = vadd.f32 %v1564, %v1552
    %v1567 = vadd.f32 %v1565, %v1553
    %v1568 = vadd.f32 %v1566, %v1554
    %v1569 = vadd.f32 %v1567, %v1555
    %v1570 = vadd.f32 %v1568, %v1556
    %v1571 = vadd.f32 %v1569, %v1557
    %v1572 = vadd.f32 %v1570, %v1558
    %v1573 = vadd.f32 %v1571, %v1559
    %v1574 = vadd.f32 %v1572, %v1560
    %v1575 = vadd.f32 %v1573, %v1561
    %v1576 = vadd.f32 %v1574, %v1562
    %v1577 = vadd.f32 %v1575, %v1563
    %v1579 = vsel %vm45, %v1576, 0
    %v1582 = vsel %vm45, %v1577, 0
    %1584 = vmatprep.subr.mxu0 0.0
    %1585 = vmatpush1.msra.mxu0 %v32
    %1586 = vmatprep.subr.mxu0 0.0
    %1587 = vmatpush1.msra.mxu0 %v33
    %1588 = vmatprep.subr.mxu0 0.0
    %1589 = vmatpush1.msra.mxu0 %v34
    %1590 = vmatprep.subr.mxu0 0.0
    %1591 = vmatpush1.msra.mxu0 %v35
    %1592 = vmatprep.subr.mxu0 0.0
    %1593 = vmatpush1.msra.mxu0 0.0
    %1594 = vmatprep.subr.mxu0 0.0
    %1595 = vmatpush1.msra.mxu0 0.0
    %1596 = vmatprep.subr.mxu0 0.0
    %1597 = vmatpush1.msra.mxu0 0.0
    %1598 = vmatprep.subr.mxu0 0.0
    %1599 = vmatpush1.msra.mxu0 0.0
    %1600 = vmatprep.subr.mxu0 0.0
    %1601 = vmatpush1.msra.mxu0 0.0
    %1602 = vmatprep.subr.mxu0 0.0
    %1603 = vmatpush1.msra.mxu0 0.0
    %1604 = vmatprep.subr.mxu0 0.0
    %1605 = vmatpush1.msra.mxu0 0.0
    %1606 = vmatprep.subr.mxu0 0.0
    %1607 = vmatpush1.msra.mxu0 0.0
    %1608 = vmatprep.subr.mxu0 0.0
    %1609 = vmatpush1.msra.mxu0 0.0
    %1610 = vmatprep.subr.mxu0 0.0
    %1611 = vmatpush1.msra.mxu0 0.0
    %1612 = vmatprep.subr.mxu0 0.0
    %1613 = vmatpush1.msra.mxu0 0.0
    %1614 = vmatprep.subr.mxu0 0.0
    %1615 = vmatpush1.msra.mxu0 0.0
    %1616 = vmatprep.subr.mxu0 0.0
    %1617 = vmatpush1.msra.mxu0 0.0
    %1618 = vmatprep.subr.mxu0 0.0
    %1619 = vmatpush1.msra.mxu0 0.0
    %1620 = vmatprep.subr.mxu0 0.0
    %1621 = vmatpush1.msra.mxu0 0.0
    %1622 = vmatprep.subr.mxu0 0.0
    %1623 = vmatpush1.msra.mxu0 0.0
    %1624 = vmatprep.subr.mxu0 0.0
    %1625 = vmatpush1.msra.mxu0 0.0
    %1626 = vmatprep.subr.mxu0 0.0
    %1627 = vmatpush1.msra.mxu0 0.0
    %1628 = vmatprep.subr.mxu0 0.0
    %1629 = vmatpush1.msra.mxu0 0.0
    %1630 = vmatprep.subr.mxu0 0.0
    %1631 = vmatpush1.msra.mxu0 0.0
    %1632 = vmatprep.subr.mxu0 0.0
    %1633 = vmatpush1.msra.mxu0 0.0
    %1634 = vmatprep.subr.mxu0 0.0
    %1635 = vmatpush1.msra.mxu0 0.0
    %1636 = vmatprep.subr.mxu0 0.0
    %1637 = vmatpush1.msra.mxu0 0.0
    %1638 = vmatprep.subr.mxu0 0.0
    %1639 = vmatpush1.msra.mxu0 0.0
    %1640 = vmatprep.subr.mxu0 0.0
    %1641 = vmatpush1.msra.mxu0 0.0
    %1642 = vmatprep.subr.mxu0 0.0
    %1643 = vmatpush1.msra.mxu0 0.0
    %1644 = vmatprep.subr.mxu0 0.0
    %1645 = vmatpush1.msra.mxu0 0.0
    %1646 = vmatprep.subr.mxu0 0.0
    %1647 = vmatpush1.msra.mxu0 0.0
    %1648 = vmatprep.mubr.f32.mxu0 0.0
    %1649 = vmatmul.mubr.f32.gmra.mrb[0].mxu0 %v1579
    %v1650 = vpop.f32.mrb[0].mxu0
    %v1651 = vadd.f32 %v788, %v1650
    %v1652 = vpop.f32.mrb[0].mxu0
    %1653 = vmatprep.mubr.f32.mxu0 0.0
    %1654 = vmatmul.mubr.f32.gmra.mrb[0].mxu0 %v1582
    %v1655 = vpop.f32.mrb[0].mxu0
    %v1656 = vadd.f32 %v788, %v1655
    %v1657 = vpop.f32.mrb[0].mxu0
    %1658 = vdwg.mxu0
    %v1659 = vadd.f32 %v871, %v1651
    %v1660 = vadd.f32 %v872, %v1656
    %v1662 = vsel %vm45, %v1659, 0
    %v1665 = vsel %vm45, %v1660, 0
    %1667 = vmatprep.subr.mxu0 0.0
    %1668 = vmatpush1.msra.mxu0 %v27
    %1669 = vmatprep.subr.mxu0 0.0
    %1670 = vmatpush1.msra.mxu0 %v28
    %1671 = vmatprep.subr.mxu0 0.0
    %1672 = vmatpush1.msra.mxu0 %v29
    %1673 = vmatprep.subr.mxu0 0.0
    %1674 = vmatpush1.msra.mxu0 %v30
    %1675 = vmatprep.subr.mxu0 0.0
    %1676 = vmatpush1.msra.mxu0 0.0
    %1677 = vmatprep.subr.mxu0 0.0
    %1678 = vmatpush1.msra.mxu0 0.0
    %1679 = vmatprep.subr.mxu0 0.0
    %1680 = vmatpush1.msra.mxu0 0.0
    %1681 = vmatprep.subr.mxu0 0.0
    %1682 = vmatpush1.msra.mxu0 0.0
    %1683 = vmatprep.subr.mxu0 0.0
    %1684 = vmatpush1.msra.mxu0 0.0
    %1685 = vmatprep.subr.mxu0 0.0
    %1686 = vmatpush1.msra.mxu0 0.0
    %1687 = vmatprep.subr.mxu0 0.0
    %1688 = vmatpush1.msra.mxu0 0.0
    %1689 = vmatprep.subr.mxu0 0.0
    %1690 = vmatpush1.msra.mxu0 0.0
    %1691 = vmatprep.subr.mxu0 0.0
    %1692 = vmatpush1.msra.mxu0 0.0
    %1693 = vmatprep.subr.mxu0 0.0
    %1694 = vmatpush1.msra.mxu0 0.0
    %1695 = vmatprep.subr.mxu0 0.0
    %1696 = vmatpush1.msra.mxu0 0.0
    %1697 = vmatprep.subr.mxu0 0.0
    %1698 = vmatpush1.msra.mxu0 0.0
    %1699 = vmatprep.subr.mxu0 0.0
    %1700 = vmatpush1.msra.mxu0 0.0
    %1701 = vmatprep.subr.mxu0 0.0
    %1702 = vmatpush1.msra.mxu0 0.0
    %1703 = vmatprep.subr.mxu0 0.0
    %1704 = vmatpush1.msra.mxu0 0.0
    %1705 = vmatprep.subr.mxu0 0.0
    %1706 = vmatpush1.msra.mxu0 0.0
    %1707 = vmatprep.subr.mxu0 0.0
    %1708 = vmatpush1.msra.mxu0 0.0
    %1709 = vmatprep.subr.mxu0 0.0
    %1710 = vmatpush1.msra.mxu0 0.0
    %1711 = vmatprep.subr.mxu0 0.0
    %1712 = vmatpush1.msra.mxu0 0.0
    %1713 = vmatprep.subr.mxu0 0.0
    %1714 = vmatpush1.msra.mxu0 0.0
    %1715 = vmatprep.subr.mxu0 0.0
    %1716 = vmatpush1.msra.mxu0 0.0
    %1717 = vmatprep.subr.mxu0 0.0
    %1718 = vmatpush1.msra.mxu0 0.0
    %1719 = vmatprep.subr.mxu0 0.0
    %1720 = vmatpush1.msra.mxu0 0.0
    %1721 = vmatprep.subr.mxu0 0.0
    %1722 = vmatpush1.msra.mxu0 0.0
    %1723 = vmatprep.subr.mxu0 0.0
    %1724 = vmatpush1.msra.mxu0 0.0
    %1725 = vmatprep.subr.mxu0 0.0
    %1726 = vmatpush1.msra.mxu0 0.0
    %1727 = vmatprep.subr.mxu0 0.0
    %1728 = vmatpush1.msra.mxu0 0.0
    %1729 = vmatprep.subr.mxu0 0.0
    %1730 = vmatpush1.msra.mxu0 0.0
    %1731 = vmatprep.mubr.f32.mxu0 0.0
    %1732 = vmatmul.mubr.f32.gmra.mrb[0].mxu0 %v1662
    %v1733 = vpop.f32.mrb[0].mxu0
    %v1734 = vadd.f32 %v43, %v1733
    %v1735 = vpop.f32.mrb[0].mxu0
    %1736 = vmatprep.mubr.f32.mxu0 0.0
    %1737 = vmatmul.mubr.f32.gmra.mrb[0].mxu0 %v1665
    %v1738 = vpop.f32.mrb[0].mxu0
    %v1739 = vadd.f32 %v43, %v1738
    %v1740 = vpop.f32.mrb[0].mxu0
    %1741 = vdwg.mxu0
    %v1742 = vmul.f32 %v1734, %v127
    %v1743 = vmul.f32 %v1739, %v128
    %v1744 = vmul.f32 %v1734, %v129
    %v1745 = vmul.f32 %v1739, %v130
    %v1746 = vmul.f32 %v1734, %v131
    %v1747 = vmul.f32 %v1739, %v132
    %v1748 = vmul.f32 %v1734, %v133
    %v1749 = vmul.f32 %v1739, %v134
    %v1750 = vmul.f32 %v1734, %v135
    %v1751 = vmul.f32 %v1739, %v136
    %v1752 = vmul.f32 %v1734, %v137
    %v1753 = vmul.f32 %v1739, %v138
    %v1754 = vmul.f32 %v1734, %v139
    %v1755 = vmul.f32 %v1739, %v140
    %v1756 = vmul.f32 %v1734, %v141
    %v1757 = vmul.f32 %v1739, %v142
    %1760 = vrot.lane.b32.xlu0 %v1734, 96
    %v1761 = vpop.permute.xlu0 %1760
    %1762 = vrot.lane.b32.xlu0 %v1739, 96
    %v1763 = vpop.permute.xlu0 %1762
    %v1765 = vsel %vm45, %v1742, 0
    %v1768 = vsel %vm45, %v1743, 0
    %v1771 = vsel %vm45, %v1744, 0
    %v1774 = vsel %vm45, %v1745, 0
    %v1777 = vsel %vm45, %v1746, 0
    %v1780 = vsel %vm45, %v1747, 0
    %v1783 = vsel %vm45, %v1748, 0
    %v1786 = vsel %vm45, %v1749, 0
    %v1789 = vsel %vm45, %v1750, 0
    %v1792 = vsel %vm45, %v1751, 0
    %v1795 = vsel %vm45, %v1752, 0
    %v1798 = vsel %vm45, %v1753, 0
    %v1801 = vsel %vm45, %v1754, 0
    %v1804 = vsel %vm45, %v1755, 0
    %v1807 = vsel %vm45, %v1756, 0
    %v1810 = vsel %vm45, %v1757, 0
    %v1812 = vsel %vm45, %v1761, 0
    %v1814 = vsel %vm45, %v1763, 0
    %1816 = vmatprep.subr.mxu0 0.0
    %1817 = vmatpush1.xpose.msra.mxu0 %v1812
    %1818 = vmatprep.subr.mxu0 0.0
    %1819 = vmatpush1.xpose.msra.mxu0 %v1814
    %1820 = vmatprep.subr.mxu0 0.0
    %1821 = vmatpush1.xpose.msra.mxu0 0.0
    %1822 = vmatprep.subr.mxu0 0.0
    %1823 = vmatpush1.xpose.msra.mxu0 0.0
    %1824 = vmatprep.subr.mxu0 0.0
    %1825 = vmatpush1.xpose.msra.mxu0 0.0
    %1826 = vmatprep.subr.mxu0 0.0
    %1827 = vmatpush1.xpose.msra.mxu0 0.0
    %1828 = vmatprep.subr.mxu0 0.0
    %1829 = vmatpush1.xpose.msra.mxu0 0.0
    %1830 = vmatprep.subr.mxu0 0.0
    %1831 = vmatpush1.xpose.msra.mxu0 0.0
    %1832 = vmatprep.subr.mxu0 0.0
    %1833 = vmatpush1.xpose.msra.mxu0 0.0
    %1834 = vmatprep.subr.mxu0 0.0
    %1835 = vmatpush1.xpose.msra.mxu0 0.0
    %1836 = vmatprep.subr.mxu0 0.0
    %1837 = vmatpush1.xpose.msra.mxu0 0.0
    %1838 = vmatprep.subr.mxu0 0.0
    %1839 = vmatpush1.xpose.msra.mxu0 0.0
    %1840 = vmatprep.subr.mxu0 0.0
    %1841 = vmatpush1.xpose.msra.mxu0 0.0
    %1842 = vmatprep.subr.mxu0 0.0
    %1843 = vmatpush1.xpose.msra.mxu0 0.0
    %1844 = vmatprep.subr.mxu0 0.0
    %1845 = vmatpush1.xpose.msra.mxu0 0.0
    %1846 = vmatprep.subr.mxu0 0.0
    %1847 = vmatpush1.xpose.msra.mxu0 0.0
    %1848 = vmatprep.subr.mxu0 0.0
    %1849 = vmatpush1.xpose.msra.mxu0 0.0
    %1850 = vmatprep.subr.mxu0 0.0
    %1851 = vmatpush1.xpose.msra.mxu0 0.0
    %1852 = vmatprep.subr.mxu0 0.0
    %1853 = vmatpush1.xpose.msra.mxu0 0.0
    %1854 = vmatprep.subr.mxu0 0.0
    %1855 = vmatpush1.xpose.msra.mxu0 0.0
    %1856 = vmatprep.subr.mxu0 0.0
    %1857 = vmatpush1.xpose.msra.mxu0 0.0
    %1858 = vmatprep.subr.mxu0 0.0
    %1859 = vmatpush1.xpose.msra.mxu0 0.0
    %1860 = vmatprep.subr.mxu0 0.0
    %1861 = vmatpush1.xpose.msra.mxu0 0.0
    %1862 = vmatprep.subr.mxu0 0.0
    %1863 = vmatpush1.xpose.msra.mxu0 0.0
    %1864 = vmatprep.subr.mxu0 0.0
    %1865 = vmatpush1.xpose.msra.mxu0 0.0
    %1866 = vmatprep.subr.mxu0 0.0
    %1867 = vmatpush1.xpose.msra.mxu0 0.0
    %1868 = vmatprep.subr.mxu0 0.0
    %1869 = vmatpush1.xpose.msra.mxu0 0.0
    %1870 = vmatprep.subr.mxu0 0.0
    %1871 = vmatpush1.xpose.msra.mxu0 0.0
    %1872 = vmatprep.subr.mxu0 0.0
    %1873 = vmatpush1.xpose.msra.mxu0 0.0
    %1874 = vmatprep.subr.mxu0 0.0
    %1875 = vmatpush1.xpose.msra.mxu0 0.0
    %1876 = vmatprep.subr.mxu0 0.0
    %1877 = vmatpush1.xpose.msra.mxu0 0.0
    %1878 = vmatprep.subr.mxu0 0.0
    %1879 = vmatpush1.xpose.msra.mxu0 0.0
    %1880 = vmatprep.mubr.f32.mxu0 0.0
    %1881 = vmatmul.mubr.f32.gmra.mrb[0].mxu0 %v1765
    %v1882 = vpop.f32.mrb[0].mxu0
    %v1883 = vadd.f32 %v159, %v1882
    %v1884 = vpop.f32.mrb[0].mxu0
    %1885 = vmatprep.mubr.f32.mxu0 0.0
    %1886 = vmatmul.mubr.f32.gmra.mrb[0].mxu0 %v1768
    %v1887 = vpop.f32.mrb[0].mxu0
    %v1888 = vadd.f32 %v160, %v1887
    %v1889 = vpop.f32.mrb[0].mxu0
    %1890 = vmatprep.mubr.f32.mxu0 0.0
    %1891 = vmatmul.mubr.f32.gmra.mrb[0].mxu0 %v1771
    %v1892 = vpop.f32.mrb[0].mxu0
    %v1893 = vadd.f32 %v161, %v1892
    %v1894 = vpop.f32.mrb[0].mxu0
    %1895 = vmatprep.mubr.f32.mxu0 0.0
    %1896 = vmatmul.mubr.f32.gmra.mrb[0].mxu0 %v1774
    %v1897 = vpop.f32.mrb[0].mxu0
    %v1898 = vadd.f32 %v162, %v1897
    %v1899 = vpop.f32.mrb[0].mxu0
    %1900 = vmatprep.mubr.f32.mxu0 0.0
    %1901 = vmatmul.mubr.f32.gmra.mrb[0].mxu0 %v1777
    %v1902 = vpop.f32.mrb[0].mxu0
    %v1903 = vadd.f32 %v163, %v1902
    %v1904 = vpop.f32.mrb[0].mxu0
    %1905 = vmatprep.mubr.f32.mxu0 0.0
    %1906 = vmatmul.mubr.f32.gmra.mrb[0].mxu0 %v1780
    %v1907 = vpop.f32.mrb[0].mxu0
    %v1908 = vadd.f32 %v164, %v1907
    %v1909 = vpop.f32.mrb[0].mxu0
    %1910 = vmatprep.mubr.f32.mxu0 0.0
    %1911 = vmatmul.mubr.f32.gmra.mrb[0].mxu0 %v1783
    %v1912 = vpop.f32.mrb[0].mxu0
    %v1913 = vadd.f32 %v165, %v1912
    %v1914 = vpop.f32.mrb[0].mxu0
    %1915 = vmatprep.mubr.f32.mxu0 0.0
    %1916 = vmatmul.mubr.f32.gmra.mrb[0].mxu0 %v1786
    %v1917 = vpop.f32.mrb[0].mxu0
    %v1918 = vadd.f32 %v166, %v1917
    %v1919 = vpop.f32.mrb[0].mxu0
    %1920 = vmatprep.mubr.f32.mxu0 0.0
    %1921 = vmatmul.mubr.f32.gmra.mrb[0].mxu0 %v1789
    %v1922 = vpop.f32.mrb[0].mxu0
    %v1923 = vadd.f32 %v167, %v1922
    %v1924 = vpop.f32.mrb[0].mxu0
    %1925 = vmatprep.mubr.f32.mxu0 0.0
    %1926 = vmatmul.mubr.f32.gmra.mrb[0].mxu0 %v1792
    %v1927 = vpop.f32.mrb[0].mxu0
    %v1928 = vadd.f32 %v168, %v1927
    %v1929 = vpop.f32.mrb[0].mxu0
    %1930 = vmatprep.mubr.f32.mxu0 0.0
    %1931 = vmatmul.mubr.f32.gmra.mrb[0].mxu0 %v1795
    %v1932 = vpop.f32.mrb[0].mxu0
    %v1933 = vadd.f32 %v169, %v1932
    %v1934 = vpop.f32.mrb[0].mxu0
    %1935 = vmatprep.mubr.f32.mxu0 0.0
    %1936 = vmatmul.mubr.f32.gmra.mrb[0].mxu0 %v1798
    %v1937 = vpop.f32.mrb[0].mxu0
    %v1938 = vadd.f32 %v170, %v1937
    %v1939 = vpop.f32.mrb[0].mxu0
    %1940 = vmatprep.mubr.f32.mxu0 0.0
    %1941 = vmatmul.mubr.f32.gmra.mrb[0].mxu0 %v1801
    %v1942 = vpop.f32.mrb[0].mxu0
    %v1943 = vadd.f32 %v171, %v1942
    %v1944 = vpop.f32.mrb[0].mxu0
    %1945 = vmatprep.mubr.f32.mxu0 0.0
    %1946 = vmatmul.mubr.f32.gmra.mrb[0].mxu0 %v1804
    %v1947 = vpop.f32.mrb[0].mxu0
    %v1948 = vadd.f32 %v172, %v1947
    %v1949 = vpop.f32.mrb[0].mxu0
    %1950 = vmatprep.mubr.f32.mxu0 0.0
    %1951 = vmatmul.mubr.f32.gmra.mrb[0].mxu0 %v1807
    %v1952 = vpop.f32.mrb[0].mxu0
    %v1953 = vadd.f32 %v173, %v1952
    %v1954 = vpop.f32.mrb[0].mxu0
    %1955 = vmatprep.mubr.f32.mxu0 0.0
    %1956 = vmatmul.mubr.f32.gmra.mrb[0].mxu0 %v1810
    %v1957 = vpop.f32.mrb[0].mxu0
    %v1958 = vadd.f32 %v174, %v1957
    %v1959 = vpop.f32.mrb[0].mxu0
    %1960 = vdwg.mxu0
    %v1961 = vsel %vm378, %v1883, -inf
    %1962 = vmax.xlane.f32.xlu0 %v1961
    %v1963 = vpop.xlane.xlu0 %1962
    %v1964 = vsel %vm378, %v1888, -inf
    %1965 = vmax.xlane.f32.xlu0 %v1964
    %v1966 = vpop.xlane.xlu0 %1965
    %v1967 = vsel %vm378, %v1893, -inf
    %1968 = vmax.xlane.f32.xlu0 %v1967
    %v1969 = vpop.xlane.xlu0 %1968
    %v1970 = vsel %vm378, %v1898, -inf
    %1971 = vmax.xlane.f32.xlu0 %v1970
    %v1972 = vpop.xlane.xlu0 %1971
    %v1973 = vsel %vm378, %v1903, -inf
    %1974 = vmax.xlane.f32.xlu0 %v1973
    %v1975 = vpop.xlane.xlu0 %1974
    %v1976 = vsel %vm378, %v1908, -inf
    %1977 = vmax.xlane.f32.xlu0 %v1976
    %v1978 = vpop.xlane.xlu0 %1977
    %v1979 = vsel %vm378, %v1913, -inf
    %1980 = vmax.xlane.f32.xlu0 %v1979
    %v1981 = vpop.xlane.xlu0 %1980
    %v1982 = vsel %vm378, %v1918, -inf
    %1983 = vmax.xlane.f32.xlu0 %v1982
    %v1984 = vpop.xlane.xlu0 %1983
    %v1985 = vsel %vm378, %v1923, -inf
    %1986 = vmax.xlane.f32.xlu0 %v1985
    %v1987 = vpop.xlane.xlu0 %1986
    %v1988 = vsel %vm378, %v1928, -inf
    %1989 = vmax.xlane.f32.xlu0 %v1988
    %v1990 = vpop.xlane.xlu0 %1989
    %v1991 = vsel %vm378, %v1933, -inf
    %1992 = vmax.xlane.f32.xlu0 %v1991
    %v1993 = vpop.xlane.xlu0 %1992
    %v1994 = vsel %vm378, %v1938, -inf
    %1995 = vmax.xlane.f32.xlu0 %v1994
    %v1996 = vpop.xlane.xlu0 %1995
    %v1997 = vsel %vm378, %v1943, -inf
    %1998 = vmax.xlane.f32.xlu0 %v1997
    %v1999 = vpop.xlane.xlu0 %1998
    %v2000 = vsel %vm378, %v1948, -inf
    %2001 = vmax.xlane.f32.xlu0 %v2000
    %v2002 = vpop.xlane.xlu0 %2001
    %v2003 = vsel %vm378, %v1953, -inf
    %2004 = vmax.xlane.f32.xlu0 %v2003
    %v2005 = vpop.xlane.xlu0 %2004
    %v2006 = vsel %vm378, %v1958, -inf
    %2007 = vmax.xlane.f32.xlu0 %v2006
    %v2008 = vpop.xlane.xlu0 %2007
    %v2009 = vsub.f32 %v1883, %v1963
    %v2010 = vsub.f32 %v1888, %v1966
    %v2011 = vsub.f32 %v1893, %v1969
    %v2012 = vsub.f32 %v1898, %v1972
    %v2013 = vsub.f32 %v1903, %v1975
    %v2014 = vsub.f32 %v1908, %v1978
    %v2015 = vsub.f32 %v1913, %v1981
    %v2016 = vsub.f32 %v1918, %v1984
    %v2017 = vsub.f32 %v1923, %v1987
    %v2018 = vsub.f32 %v1928, %v1990
    %v2019 = vsub.f32 %v1933, %v1993
    %v2020 = vsub.f32 %v1938, %v1996
    %v2021 = vsub.f32 %v1943, %v1999
    %v2022 = vsub.f32 %v1948, %v2002
    %v2023 = vsub.f32 %v1953, %v2005
    %v2024 = vsub.f32 %v1958, %v2008
    %v2025 = vmul.f32 %v2009, 1.442695
    %v2026 = vpow.pop %v2025
    %v2027 = vmul.f32 %v2010, 1.442695
    %v2028 = vpow.pop %v2027
    %v2029 = vmul.f32 %v2011, 1.442695
    %v2030 = vpow.pop %v2029
    %v2031 = vmul.f32 %v2012, 1.442695
    %v2032 = vpow.pop %v2031
    %v2033 = vmul.f32 %v2013, 1.442695
    %v2034 = vpow.pop %v2033
    %v2035 = vmul.f32 %v2014, 1.442695
    %v2036 = vpow.pop %v2035
    %v2037 = vmul.f32 %v2015, 1.442695
    %v2038 = vpow.pop %v2037
    %v2039 = vmul.f32 %v2016, 1.442695
    %v2040 = vpow.pop %v2039
    %v2041 = vmul.f32 %v2017, 1.442695
    %v2042 = vpow.pop %v2041
    %v2043 = vmul.f32 %v2018, 1.442695
    %v2044 = vpow.pop %v2043
    %v2045 = vmul.f32 %v2019, 1.442695
    %v2046 = vpow.pop %v2045
    %v2047 = vmul.f32 %v2020, 1.442695
    %v2048 = vpow.pop %v2047
    %v2049 = vmul.f32 %v2021, 1.442695
    %v2050 = vpow.pop %v2049
    %v2051 = vmul.f32 %v2022, 1.442695
    %v2052 = vpow.pop %v2051
    %v2053 = vmul.f32 %v2023, 1.442695
    %v2054 = vpow.pop %v2053
    %v2055 = vmul.f32 %v2024, 1.442695
    %v2056 = vpow.pop %v2055
    %v2057 = vsel %vm378, %v2026, 0.0
    %2058 = vadd.xlane.f32.xlu0 %v2057
    %v2059 = vpop.xlane.xlu0 %2058
    %v2060 = vsel %vm378, %v2028, 0.0
    %2061 = vadd.xlane.f32.xlu0 %v2060
    %v2062 = vpop.xlane.xlu0 %2061
    %v2063 = vsel %vm378, %v2030, 0.0
    %2064 = vadd.xlane.f32.xlu0 %v2063
    %v2065 = vpop.xlane.xlu0 %2064
    %v2066 = vsel %vm378, %v2032, 0.0
    %2067 = vadd.xlane.f32.xlu0 %v2066
    %v2068 = vpop.xlane.xlu0 %2067
    %v2069 = vsel %vm378, %v2034, 0.0
    %2070 = vadd.xlane.f32.xlu0 %v2069
    %v2071 = vpop.xlane.xlu0 %2070
    %v2072 = vsel %vm378, %v2036, 0.0
    %2073 = vadd.xlane.f32.xlu0 %v2072
    %v2074 = vpop.xlane.xlu0 %2073
    %v2075 = vsel %vm378, %v2038, 0.0
    %2076 = vadd.xlane.f32.xlu0 %v2075
    %v2077 = vpop.xlane.xlu0 %2076
    %v2078 = vsel %vm378, %v2040, 0.0
    %2079 = vadd.xlane.f32.xlu0 %v2078
    %v2080 = vpop.xlane.xlu0 %2079
    %v2081 = vsel %vm378, %v2042, 0.0
    %2082 = vadd.xlane.f32.xlu0 %v2081
    %v2083 = vpop.xlane.xlu0 %2082
    %v2084 = vsel %vm378, %v2044, 0.0
    %2085 = vadd.xlane.f32.xlu0 %v2084
    %v2086 = vpop.xlane.xlu0 %2085
    %v2087 = vsel %vm378, %v2046, 0.0
    %2088 = vadd.xlane.f32.xlu0 %v2087
    %v2089 = vpop.xlane.xlu0 %2088
    %v2090 = vsel %vm378, %v2048, 0.0
    %2091 = vadd.xlane.f32.xlu0 %v2090
    %v2092 = vpop.xlane.xlu0 %2091
    %v2093 = vsel %vm378, %v2050, 0.0
    %2094 = vadd.xlane.f32.xlu0 %v2093
    %v2095 = vpop.xlane.xlu0 %2094
    %v2096 = vsel %vm378, %v2052, 0.0
    %2097 = vadd.xlane.f32.xlu0 %v2096
    %v2098 = vpop.xlane.xlu0 %2097
    %v2099 = vsel %vm378, %v2054, 0.0
    %2100 = vadd.xlane.f32.xlu0 %v2099
    %v2101 = vpop.xlane.xlu0 %2100
    %v2102 = vsel %vm378, %v2056, 0.0
    %2103 = vadd.xlane.f32.xlu0 %v2102
    %v2104 = vpop.xlane.xlu0 %2103
    %v2105 = vrcp.pop %v2059
    %v2106 = vrcp.pop %v2062
    %v2107 = vrcp.pop %v2065
    %v2108 = vrcp.pop %v2068
    %v2109 = vrcp.pop %v2071
    %v2110 = vrcp.pop %v2074
    %v2111 = vrcp.pop %v2077
    %v2112 = vrcp.pop %v2080
    %v2113 = vrcp.pop %v2083
    %v2114 = vrcp.pop %v2086
    %v2115 = vrcp.pop %v2089
    %v2116 = vrcp.pop %v2092
    %v2117 = vrcp.pop %v2095
    %v2118 = vrcp.pop %v2098
    %v2119 = vrcp.pop %v2101
    %v2120 = vrcp.pop %v2104
    %v2121 = vmul.f32 %v2026, %v2105
    %v2122 = vmul.f32 %v2028, %v2106
    %v2123 = vmul.f32 %v2030, %v2107
    %v2124 = vmul.f32 %v2032, %v2108
    %v2125 = vmul.f32 %v2034, %v2109
    %v2126 = vmul.f32 %v2036, %v2110
    %v2127 = vmul.f32 %v2038, %v2111
    %v2128 = vmul.f32 %v2040, %v2112
    %v2129 = vmul.f32 %v2042, %v2113
    %v2130 = vmul.f32 %v2044, %v2114
    %v2131 = vmul.f32 %v2046, %v2115
    %v2132 = vmul.f32 %v2048, %v2116
    %v2133 = vmul.f32 %v2050, %v2117
    %v2134 = vmul.f32 %v2052, %v2118
    %v2135 = vmul.f32 %v2054, %v2119
    %v2136 = vmul.f32 %v2056, %v2120
    %2137 = vrot.lane.b32.xlu0 %v1734, 64
    %v2138 = vpop.permute.xlu0 %2137
    %2139 = vrot.lane.b32.xlu0 %v1739, 64
    %v2140 = vpop.permute.xlu0 %2139
    %v2144 = vsel %vm378, %v2121, 0
    %v2147 = vsel %vm378, %v2122, 0
    %v2150 = vsel %vm378, %v2123, 0
    %v2153 = vsel %vm378, %v2124, 0
    %v2156 = vsel %vm378, %v2125, 0
    %v2159 = vsel %vm378, %v2126, 0
    %v2162 = vsel %vm378, %v2127, 0
    %v2165 = vsel %vm378, %v2128, 0
    %v2168 = vsel %vm378, %v2129, 0
    %v2171 = vsel %vm378, %v2130, 0
    %v2174 = vsel %vm378, %v2131, 0
    %v2177 = vsel %vm378, %v2132, 0
    %v2180 = vsel %vm378, %v2133, 0
    %v2183 = vsel %vm378, %v2134, 0
    %v2186 = vsel %vm378, %v2135, 0
    %v2189 = vsel %vm378, %v2136, 0
    %2191 = vmatprep.subr.mxu0 0.0
    %2192 = vmatpush1.msra.mxu0 %v2138
    %2193 = vmatprep.subr.mxu0 0.0
    %2194 = vmatpush1.msra.mxu0 %v2140
    %2195 = vmatprep.subr.mxu0 0.0
    %2196 = vmatpush1.msra.mxu0 0.0
    %2197 = vmatprep.subr.mxu0 0.0
    %2198 = vmatpush1.msra.mxu0 0.0
    %2199 = vmatprep.subr.mxu0 0.0
    %2200 = vmatpush1.msra.mxu0 0.0
    %2201 = vmatprep.subr.mxu0 0.0
    %2202 = vmatpush1.msra.mxu0 0.0
    %2203 = vmatprep.subr.mxu0 0.0
    %2204 = vmatpush1.msra.mxu0 0.0
    %2205 = vmatprep.subr.mxu0 0.0
    %2206 = vmatpush1.msra.mxu0 0.0
    %2207 = vmatprep.subr.mxu0 0.0
    %2208 = vmatpush1.msra.mxu0 0.0
    %2209 = vmatprep.subr.mxu0 0.0
    %2210 = vmatpush1.msra.mxu0 0.0
    %2211 = vmatprep.subr.mxu0 0.0
    %2212 = vmatpush1.msra.mxu0 0.0
    %2213 = vmatprep.subr.mxu0 0.0
    %2214 = vmatpush1.msra.mxu0 0.0
    %2215 = vmatprep.subr.mxu0 0.0
    %2216 = vmatpush1.msra.mxu0 0.0
    %2217 = vmatprep.subr.mxu0 0.0
    %2218 = vmatpush1.msra.mxu0 0.0
    %2219 = vmatprep.subr.mxu0 0.0
    %2220 = vmatpush1.msra.mxu0 0.0
    %2221 = vmatprep.subr.mxu0 0.0
    %2222 = vmatpush1.msra.mxu0 0.0
    %2223 = vmatprep.subr.mxu0 0.0
    %2224 = vmatpush1.msra.mxu0 0.0
    %2225 = vmatprep.subr.mxu0 0.0
    %2226 = vmatpush1.msra.mxu0 0.0
    %2227 = vmatprep.subr.mxu0 0.0
    %2228 = vmatpush1.msra.mxu0 0.0
    %2229 = vmatprep.subr.mxu0 0.0
    %2230 = vmatpush1.msra.mxu0 0.0
    %2231 = vmatprep.subr.mxu0 0.0
    %2232 = vmatpush1.msra.mxu0 0.0
    %2233 = vmatprep.subr.mxu0 0.0
    %2234 = vmatpush1.msra.mxu0 0.0
    %2235 = vmatprep.subr.mxu0 0.0
    %2236 = vmatpush1.msra.mxu0 0.0
    %2237 = vmatprep.subr.mxu0 0.0
    %2238 = vmatpush1.msra.mxu0 0.0
    %2239 = vmatprep.subr.mxu0 0.0
    %2240 = vmatpush1.msra.mxu0 0.0
    %2241 = vmatprep.subr.mxu0 0.0
    %2242 = vmatpush1.msra.mxu0 0.0
    %2243 = vmatprep.subr.mxu0 0.0
    %2244 = vmatpush1.msra.mxu0 0.0
    %2245 = vmatprep.subr.mxu0 0.0
    %2246 = vmatpush1.msra.mxu0 0.0
    %2247 = vmatprep.subr.mxu0 0.0
    %2248 = vmatpush1.msra.mxu0 0.0
    %2249 = vmatprep.subr.mxu0 0.0
    %2250 = vmatpush1.msra.mxu0 0.0
    %2251 = vmatprep.subr.mxu0 0.0
    %2252 = vmatpush1.msra.mxu0 0.0
    %2253 = vmatprep.subr.mxu0 0.0
    %2254 = vmatpush1.msra.mxu0 0.0
    %2255 = vmatprep.mubr.f32.mxu0 0.0
    %2256 = vmatmul.mubr.f32.gmra.mrb[0].mxu0 %v2144
    %v2257 = vpop.f32.mrb[0].mxu0
    %v2258 = vadd.f32 0.0, %v2257
    %v2259 = vpop.f32.mrb[0].mxu0
    %2260 = vmatprep.mubr.f32.mxu0 0.0
    %2261 = vmatmul.mubr.f32.gmra.mrb[0].mxu0 %v2147
    %v2262 = vpop.f32.mrb[0].mxu0
    %v2263 = vadd.f32 0.0, %v2262
    %v2264 = vpop.f32.mrb[0].mxu0
    %2265 = vmatprep.mubr.f32.mxu0 0.0
    %2266 = vmatmul.mubr.f32.gmra.mrb[0].mxu0 %v2150
    %v2267 = vpop.f32.mrb[0].mxu0
    %v2268 = vadd.f32 0.0, %v2267
    %v2269 = vpop.f32.mrb[0].mxu0
    %2270 = vmatprep.mubr.f32.mxu0 0.0
    %2271 = vmatmul.mubr.f32.gmra.mrb[0].mxu0 %v2153
    %v2272 = vpop.f32.mrb[0].mxu0
    %v2273 = vadd.f32 0.0, %v2272
    %v2274 = vpop.f32.mrb[0].mxu0
    %2275 = vmatprep.mubr.f32.mxu0 0.0
    %2276 = vmatmul.mubr.f32.gmra.mrb[0].mxu0 %v2156
    %v2277 = vpop.f32.mrb[0].mxu0
    %v2278 = vadd.f32 0.0, %v2277
    %v2279 = vpop.f32.mrb[0].mxu0
    %2280 = vmatprep.mubr.f32.mxu0 0.0
    %2281 = vmatmul.mubr.f32.gmra.mrb[0].mxu0 %v2159
    %v2282 = vpop.f32.mrb[0].mxu0
    %v2283 = vadd.f32 0.0, %v2282
    %v2284 = vpop.f32.mrb[0].mxu0
    %2285 = vmatprep.mubr.f32.mxu0 0.0
    %2286 = vmatmul.mubr.f32.gmra.mrb[0].mxu0 %v2162
    %v2287 = vpop.f32.mrb[0].mxu0
    %v2288 = vadd.f32 0.0, %v2287
    %v2289 = vpop.f32.mrb[0].mxu0
    %2290 = vmatprep.mubr.f32.mxu0 0.0
    %2291 = vmatmul.mubr.f32.gmra.mrb[0].mxu0 %v2165
    %v2292 = vpop.f32.mrb[0].mxu0
    %v2293 = vadd.f32 0.0, %v2292
    %v2294 = vpop.f32.mrb[0].mxu0
    %2295 = vmatprep.mubr.f32.mxu0 0.0
    %2296 = vmatmul.mubr.f32.gmra.mrb[0].mxu0 %v2168
    %v2297 = vpop.f32.mrb[0].mxu0
    %v2298 = vadd.f32 0.0, %v2297
    %v2299 = vpop.f32.mrb[0].mxu0
    %2300 = vmatprep.mubr.f32.mxu0 0.0
    %2301 = vmatmul.mubr.f32.gmra.mrb[0].mxu0 %v2171
    %v2302 = vpop.f32.mrb[0].mxu0
    %v2303 = vadd.f32 0.0, %v2302
    %v2304 = vpop.f32.mrb[0].mxu0
    %2305 = vmatprep.mubr.f32.mxu0 0.0
    %2306 = vmatmul.mubr.f32.gmra.mrb[0].mxu0 %v2174
    %v2307 = vpop.f32.mrb[0].mxu0
    %v2308 = vadd.f32 0.0, %v2307
    %v2309 = vpop.f32.mrb[0].mxu0
    %2310 = vmatprep.mubr.f32.mxu0 0.0
    %2311 = vmatmul.mubr.f32.gmra.mrb[0].mxu0 %v2177
    %v2312 = vpop.f32.mrb[0].mxu0
    %v2313 = vadd.f32 0.0, %v2312
    %v2314 = vpop.f32.mrb[0].mxu0
    %2315 = vmatprep.mubr.f32.mxu0 0.0
    %2316 = vmatmul.mubr.f32.gmra.mrb[0].mxu0 %v2180
    %v2317 = vpop.f32.mrb[0].mxu0
    %v2318 = vadd.f32 0.0, %v2317
    %v2319 = vpop.f32.mrb[0].mxu0
    %2320 = vmatprep.mubr.f32.mxu0 0.0
    %2321 = vmatmul.mubr.f32.gmra.mrb[0].mxu0 %v2183
    %v2322 = vpop.f32.mrb[0].mxu0
    %v2323 = vadd.f32 0.0, %v2322
    %v2324 = vpop.f32.mrb[0].mxu0
    %2325 = vmatprep.mubr.f32.mxu0 0.0
    %2326 = vmatmul.mubr.f32.gmra.mrb[0].mxu0 %v2186
    %v2327 = vpop.f32.mrb[0].mxu0
    %v2328 = vadd.f32 0.0, %v2327
    %v2329 = vpop.f32.mrb[0].mxu0
    %2330 = vmatprep.mubr.f32.mxu0 0.0
    %2331 = vmatmul.mubr.f32.gmra.mrb[0].mxu0 %v2189
    %v2332 = vpop.f32.mrb[0].mxu0
    %v2333 = vadd.f32 0.0, %v2332
    %v2334 = vpop.f32.mrb[0].mxu0
    %2335 = vdwg.mxu0
    %v2336 = vmul.f32 %v2258, %v127
    %v2337 = vmul.f32 %v2263, %v128
    %v2338 = vmul.f32 %v2268, %v129
    %v2339 = vmul.f32 %v2273, %v130
    %v2340 = vmul.f32 %v2278, %v131
    %v2341 = vmul.f32 %v2283, %v132
    %v2342 = vmul.f32 %v2288, %v133
    %v2343 = vmul.f32 %v2293, %v134
    %v2344 = vmul.f32 %v2298, %v135
    %v2345 = vmul.f32 %v2303, %v136
    %v2346 = vmul.f32 %v2308, %v137
    %v2347 = vmul.f32 %v2313, %v138
    %v2348 = vmul.f32 %v2318, %v139
    %v2349 = vmul.f32 %v2323, %v140
    %v2350 = vmul.f32 %v2328, %v141
    %v2351 = vmul.f32 %v2333, %v142
    %v2352 = vadd.f32 %v2336, %v2338
    %v2353 = vadd.f32 %v2337, %v2339
    %v2354 = vadd.f32 %v2352, %v2340
    %v2355 = vadd.f32 %v2353, %v2341
    %v2356 = vadd.f32 %v2354, %v2342
    %v2357 = vadd.f32 %v2355, %v2343
    %v2358 = vadd.f32 %v2356, %v2344
    %v2359 = vadd.f32 %v2357, %v2345
    %v2360 = vadd.f32 %v2358, %v2346
    %v2361 = vadd.f32 %v2359, %v2347
    %v2362 = vadd.f32 %v2360, %v2348
    %v2363 = vadd.f32 %v2361, %v2349
    %v2364 = vadd.f32 %v2362, %v2350
    %v2365 = vadd.f32 %v2363, %v2351
    %v2367 = vsel %vm45, %v2364, 0
    %v2370 = vsel %vm45, %v2365, 0
    %2372 = vmatprep.subr.mxu0 0.0
    %2373 = vmatpush1.msra.mxu0 %v32
    %2374 = vmatprep.subr.mxu0 0.0
    %2375 = vmatpush1.msra.mxu0 %v33
    %2376 = vmatprep.subr.mxu0 0.0
    %2377 = vmatpush1.msra.mxu0 %v34
    %2378 = vmatprep.subr.mxu0 0.0
    %2379 = vmatpush1.msra.mxu0 %v35
    %2380 = vmatprep.subr.mxu0 0.0
    %2381 = vmatpush1.msra.mxu0 0.0
    %2382 = vmatprep.subr.mxu0 0.0
    %2383 = vmatpush1.msra.mxu0 0.0
    %2384 = vmatprep.subr.mxu0 0.0
    %2385 = vmatpush1.msra.mxu0 0.0
    %2386 = vmatprep.subr.mxu0 0.0
    %2387 = vmatpush1.msra.mxu0 0.0
    %2388 = vmatprep.subr.mxu0 0.0
    %2389 = vmatpush1.msra.mxu0 0.0
    %2390 = vmatprep.subr.mxu0 0.0
    %2391 = vmatpush1.msra.mxu0 0.0
    %2392 = vmatprep.subr.mxu0 0.0
    %2393 = vmatpush1.msra.mxu0 0.0
    %2394 = vmatprep.subr.mxu0 0.0
    %2395 = vmatpush1.msra.mxu0 0.0
    %2396 = vmatprep.subr.mxu0 0.0
    %2397 = vmatpush1.msra.mxu0 0.0
    %2398 = vmatprep.subr.mxu0 0.0
    %2399 = vmatpush1.msra.mxu0 0.0
    %2400 = vmatprep.subr.mxu0 0.0
    %2401 = vmatpush1.msra.mxu0 0.0
    %2402 = vmatprep.subr.mxu0 0.0
    %2403 = vmatpush1.msra.mxu0 0.0
    %2404 = vmatprep.subr.mxu0 0.0
    %2405 = vmatpush1.msra.mxu0 0.0
    %2406 = vmatprep.subr.mxu0 0.0
    %2407 = vmatpush1.msra.mxu0 0.0
    %2408 = vmatprep.subr.mxu0 0.0
    %2409 = vmatpush1.msra.mxu0 0.0
    %2410 = vmatprep.subr.mxu0 0.0
    %2411 = vmatpush1.msra.mxu0 0.0
    %2412 = vmatprep.subr.mxu0 0.0
    %2413 = vmatpush1.msra.mxu0 0.0
    %2414 = vmatprep.subr.mxu0 0.0
    %2415 = vmatpush1.msra.mxu0 0.0
    %2416 = vmatprep.subr.mxu0 0.0
    %2417 = vmatpush1.msra.mxu0 0.0
    %2418 = vmatprep.subr.mxu0 0.0
    %2419 = vmatpush1.msra.mxu0 0.0
    %2420 = vmatprep.subr.mxu0 0.0
    %2421 = vmatpush1.msra.mxu0 0.0
    %2422 = vmatprep.subr.mxu0 0.0
    %2423 = vmatpush1.msra.mxu0 0.0
    %2424 = vmatprep.subr.mxu0 0.0
    %2425 = vmatpush1.msra.mxu0 0.0
    %2426 = vmatprep.subr.mxu0 0.0
    %2427 = vmatpush1.msra.mxu0 0.0
    %2428 = vmatprep.subr.mxu0 0.0
    %2429 = vmatpush1.msra.mxu0 0.0
    %2430 = vmatprep.subr.mxu0 0.0
    %2431 = vmatpush1.msra.mxu0 0.0
    %2432 = vmatprep.subr.mxu0 0.0
    %2433 = vmatpush1.msra.mxu0 0.0
    %2434 = vmatprep.subr.mxu0 0.0
    %2435 = vmatpush1.msra.mxu0 0.0
    %2436 = vmatprep.mubr.f32.mxu0 0.0
    %2437 = vmatmul.mubr.f32.gmra.mrb[0].mxu0 %v2367
    %v2438 = vpop.f32.mrb[0].mxu0
    %v2439 = vadd.f32 %v788, %v2438
    %v2440 = vpop.f32.mrb[0].mxu0
    %2441 = vmatprep.mubr.f32.mxu0 0.0
    %2442 = vmatmul.mubr.f32.gmra.mrb[0].mxu0 %v2370
    %v2443 = vpop.f32.mrb[0].mxu0
    %v2444 = vadd.f32 %v788, %v2443
    %v2445 = vpop.f32.mrb[0].mxu0
    %2446 = vdwg.mxu0
    %v2447 = vadd.f32 %v1659, %v2439
    %v2448 = vadd.f32 %v1660, %v2444
    %2449 = vst.msk [vmem:[#allocation2] sm:$0xff] %vm45, %v2447
    %2450 = vst.msk [vmem:[#allocation2 + $0x8] sm:$0xff] %vm45, %v2448
    // Predicated region
    $region30: #{quantum_geometric_attention_forward.1} parent=1 // pred_check
      _
    $region31: #{quantum_geometric_attention_forward.1} parent=1 // pred_check_branch
      %2452 = sbr.rel (0) target = $region33
    $region32: #{quantum_geometric_attention_forward.1} parent=1 // pred_region
      %s2454 = ssub.s32 256, 256
      %2455 = vsyncadd [#allocation3], %s2454
      %s2456 = sshll.u32 [#allocation2], 4
      %s2457 = int_to_ptr.vmem [resolvable:$true] %s2456
      %2462 = dma.vmem_to_hbm [thread:$0]  %s2457, 256, %s7, [#allocation3], 128, 128, 8
    $region33: #{quantum_geometric_attention_forward.1} parent=1 // pred_fallthru
      _
    // Predicated region
    $region34: #{quantum_geometric_attention_forward.1} parent=1 // pred_check
      _
    $region35: #{quantum_geometric_attention_forward.1} parent=1 // pred_check_branch
      %2464 = sbr.rel (0) target = $region37
    $region36: #{quantum_geometric_attention_forward.1} parent=1 // pred_region
      %2465 = dma.done [#allocation3], 256
    $region37: #{quantum_geometric_attention_forward.1} parent=1 // pred_fallthru
      _
    %2466 = vsyncpa [#allocation3], 1

</llo_original>
